<compile_context>
chip_gen: v6e
topology: v6e:2x2x1
jax: 0.10.0
libtpu: 0.0.40
codegen_flags: <defaults>
</compile_context>

<pallas_src>
import functools

import jax
import jax.numpy as jnp
from jax import lax
from jax.experimental import pallas as pl
from jax.experimental.pallas import tpu as pltpu

_NEG_INF = float("-inf")


def _fused_attention_kernel(x1_ref, x2v_ref, x3_ref, w_ref, bias_ref, out_ref,
                            *, approx_recip):
    """One (batch, L1-tile) grid step.

    x1_ref  : (1, TM, Dp)    VMEM  query rows for this tile (D zero-padded)
    x2v_ref : (1, L2p, Hp)   VMEM  precomputed ReLU(x2 @ W) * d (padded)
    x3_ref  : (1, L2p, Dvp)  VMEM  values (== x2 when x3 is None), padded
    w_ref   : (Dp, Hp)       VMEM  projection weight (pre-transposed, padded)
    bias_ref: (1, 1, L2p)    VMEM  additive mask bias (0 or -inf; -inf on pad)
    out_ref : (1, TM, Dvp)   VMEM  matched_seq tile (f32)
    """
    # Query-side representation for this L1 tile (MXU, f32 accumulation).
    x1_rep = jnp.maximum(
        jnp.dot(x1_ref[0], w_ref[...], preferred_element_type=jnp.float32),
        0.0)

    # scores[q, k] = sum_h x1_rep[q, h] * x2_rep_v[k, h]
    # Contract the shared lane axis of both operands (no transpose / XLU).
    scores = lax.dot_general(
        x1_rep.astype(x2v_ref.dtype), x2v_ref[0],
        dimension_numbers=(((1,), (1,)), ((), ())),
        preferred_element_type=jnp.float32)                     # (TM, L2p)

    # masked_fill_(-inf) as an additive bias, then a numerically stable
    # softmax with DEFERRED normalization: matmul the unnormalized p and
    # scale the small (TM, Dvp) result by 1/denom afterwards instead of
    # dividing the whole (TM, L2p) slab on the VPU.
    scores = scores + bias_ref[0]
    m = jnp.max(scores, axis=-1, keepdims=True)
    p = jnp.exp(scores - m)
    denom = jnp.sum(p, axis=-1, keepdims=True)                  # (TM, 1)

    matched = jnp.dot(p.astype(x3_ref.dtype), x3_ref[0],
                      preferred_element_type=jnp.float32)       # (TM, Dvp)
    if approx_recip:
        inv = pl.reciprocal(denom, approx=True)   # EUP slot, essentially free
    else:
        inv = 1.0 / denom                         # exact f32 path
    out_ref[0] = (matched * inv).astype(out_ref.dtype)
    # NOTE: rows whose keys are ALL masked produce NaN (matches PyTorch's
    # masked_fill(-inf) + softmax); the original module only printed a count.


def _round_up(n, m):
    return ((n + m - 1) // m) * m


def _pick_tile(n):
    for t in (256, 128, 64, 32, 16, 8):
        if n >= t:
            return t
    return n


def _vmem_limit_bytes():
    cap = 64 * 1024 * 1024
    try:
        cap = int(pltpu.get_tpu_info().vmem_capacity_bytes)
    except Exception:
        pass
    # ~3/4 of physical VMEM: ~48 MiB on v7x (64 MiB), ~96 MiB on v5e/v6e.
    return max(32 * 1024 * 1024, min(cap * 3 // 4, 100 * 1024 * 1024))


def get_attention_hiddens(x1, x2, x2_mask, w_t, d, x3=None, *,
                          use_bf16=None, tm=None):
    """
    x1      : (B, L1, D)   queries
    x2      : (B, L2, D)   keys
    x2_mask : (B, L2)      bool, True = masked (excluded from attention)
    w_t     : (D, H)       projection weight, already transposed (store it
                           this way once at model load; no per-call .T)
    d       : (H,), (1,H) or (1,1,H)  diagonal of D (linear_final parameter)
    x3      : (B, L2, Dv)  values; defaults to x2
    use_bf16: None -> True (bf16 MXU operands, f32 accumulation & softmax);
              False -> exact f32 parity with the PyTorch module.
    returns : (B, L1, Dv)  matched_seq  (float32)
    """
    if x3 is None:
        x3 = x2
    if use_bf16 is None:
        use_bf16 = True   # v6e/v7x fast path by default

    B, L1, D = x1.shape
    _, L2, Dv = x3.shape
    H = w_t.shape[1]

    # Lane-dense padding of every matmul dimension. All pads are exact:
    # zero rows/cols contribute zero and padded key positions get -inf bias.
    Dp = _round_up(max(D, 128), 128)
    Hp = _round_up(max(H, 128), 128)
    Dvp = _round_up(max(Dv, 128), 128)
    L2p = _round_up(max(L2, 128), 128)

    f32 = jnp.float32
    x1f = jnp.asarray(x1, f32)
    x2f = jnp.asarray(x2, f32)
    x3f = jnp.asarray(x3, f32)
    wf = jnp.asarray(w_t, f32)                       # (D, H)
    df = jnp.asarray(d, f32).reshape(1, 1, H)

    # Key-side representation hoisted out of the kernel (one XLA matmul per
    # call): removes the per-batch VMEM scratch + pl.when carry, shrinks the
    # per-batch resident block and lets both grid axes run "parallel".
    x2_rep_v = jax.nn.relu(
        jnp.einsum("bld,dh->blh", x2f, wf,
                   precision=jax.lax.Precision.HIGHEST)) * df   # (B, L2, H)

    in_dtype = jnp.bfloat16 if use_bf16 else jnp.float32

    x1p = jnp.zeros((B, L1, Dp), in_dtype).at[:, :, :D].set(
        x1f.astype(in_dtype))
    wp = jnp.zeros((Dp, Hp), in_dtype).at[:D, :H].set(wf.astype(in_dtype))
    x2vp = jnp.zeros((B, L2p, Hp), in_dtype).at[:, :L2, :H].set(
        x2_rep_v.astype(in_dtype))
    x3p = jnp.zeros((B, L2p, Dvp), in_dtype).at[:, :L2, :Dv].set(
        x3f.astype(in_dtype))

    # masked_fill_(-inf) as an additive bias; padded key columns also -inf.
    mask = jnp.asarray(x2_mask, bool)
    bias = jnp.full((B, 1, L2p), _NEG_INF, f32)
    bias = bias.at[:, 0, :L2].set(
        jnp.where(mask, _NEG_INF, 0.0).astype(f32))

    if tm is None:
        tm = _pick_tile(L1)
    tm = min(tm, L1)
    if use_bf16 and tm != L1 and tm % 16 != 0:
        tm = L1   # full-dim block avoids bf16 sublane-packing relayout
    grid = (B, pl.cdiv(L1, tm))

    kernel = functools.partial(_fused_attention_kernel,
                               approx_recip=use_bf16)

    def make_call(buffered_invariants):
        if buffered_invariants:
            # W's block index never changes -> a second pipeline buffer is
            # pure VMEM waste.
            w_spec = pl.BlockSpec((Dp, Hp), lambda b, i: (0, 0),
                                  pipeline_mode=pl.Buffered(1))
        else:
            w_spec = pl.BlockSpec((Dp, Hp), lambda b, i: (0, 0))
        return pl.pallas_call(
            kernel,
            out_shape=jax.ShapeDtypeStruct((B, L1, Dvp), jnp.float32),
            grid_spec=pltpu.PrefetchScalarGridSpec(
                num_scalar_prefetch=0,
                grid=grid,
                in_specs=[
                    pl.BlockSpec((1, tm, Dp), lambda b, i: (b, i, 0)),    # x1
                    pl.BlockSpec((1, L2p, Hp), lambda b, i: (b, 0, 0)),   # x2_rep_v
                    pl.BlockSpec((1, L2p, Dvp), lambda b, i: (b, 0, 0)),  # x3 values
                    w_spec,                                               # W
                    pl.BlockSpec((1, 1, L2p), lambda b, i: (b, 0, 0)),    # mask bias
                ],
                out_specs=pl.BlockSpec((1, tm, Dvp), lambda b, i: (b, i, 0)),
            ),
            compiler_params=pltpu.CompilerParams(
                # No cross-iteration carry -> both axes independent; on v7x
                # this lets the L1-tile axis shard across both TensorCores.
                dimension_semantics=("parallel", "parallel"),
                vmem_limit_bytes=_vmem_limit_bytes(),
            ),
        )

    try:
        out = make_call(True)(x1p, x2vp, x3p, wp, bias)
    except Exception:
        # Fallback if pl.Buffered(1) is not supported by this jax version.
        out = make_call(False)(x1p, x2vp, x3p, wp, bias)

    return out[:, :, :Dv]


def get_attention_hiddens_ref(x1, x2, x2_mask, weight, linear_final, x3=None):
    """Plain-JAX reference mirroring the PyTorch forward (eval mode,
    drop_diagonal=False, return_scores=False). `weight` is (H, D) as in
    nn.Linear."""
    if x3 is None:
        x3 = x2
    x1_rep = jax.nn.relu(jnp.einsum("bld,hd->blh", x1, weight))
    x2_rep = jax.nn.relu(jnp.einsum("bld,hd->blh", x2, weight))
    x2_rep_v = linear_final * x2_rep
    scores = jnp.einsum("bqh,bkh->bqk", x1_rep, x2_rep_v)
    scores = jnp.where(x2_mask[:, None, :], -jnp.inf, scores)
    alpha = jax.nn.softmax(scores, axis=-1)
    return jnp.einsum("bqk,bkd->bqd", alpha, x3)


if __name__ == "__main__":
    # Small shapes consistent with the module's forward.
    B, L1, L2 = 2, 8, 8
    input_size = 32
    hidden = 16

    key = jax.random.PRNGKey(0)
    k1, k2, kw = jax.random.split(key, 3)

    x1 = jax.random.normal(k1, (B, L1, input_size), jnp.float32)
    x2 = jax.random.normal(k2, (B, L2, input_size), jnp.float32)

    # nn.Linear(input_size, hidden, bias=False) -> weight (hidden, input_size).
    bound = 1.0 / (input_size ** 0.5)
    weight = jax.random.uniform(
        kw, (hidden, input_size), jnp.float32, minval=-bound, maxval=bound)
    w_t = weight.T                                  # stored transposed once
    # similarity_attention=False -> linear_final = ones(1, 1, hidden)
    linear_final = jnp.ones((1, 1, hidden), jnp.float32)

    # x2_mask: mask the last two key positions of every row.
    x2_mask = jnp.zeros((B, L2), bool).at[:, L2 - 2:].set(True)

    ref = get_attention_hiddens_ref(x1, x2, x2_mask, weight, linear_final)

    # Exact f32 path (parity with the PyTorch module).
    out_f32 = jax.block_until_ready(
        get_attention_hiddens(x1, x2, x2_mask, w_t, linear_final,
                              use_bf16=False))
    assert out_f32.shape == (B, L1, input_size)
    assert jnp.allclose(out_f32, ref, atol=1e-4, rtol=1e-4)

    # Default fast path: bf16 MXU operands, f32 accumulation + f32 softmax.
    out_def = jax.block_until_ready(
        get_attention_hiddens(x1, x2, x2_mask, w_t, linear_final))
    assert out_def.shape == (B, L1, input_size)
    assert jnp.allclose(out_def, ref, atol=1e-1, rtol=1e-1)

    print("KERNEL_OK")
</pallas_src>

<mosaic_0001>
module attributes {stable_mosaic.version = 11 : i64} {
  func.func @_fused_attention_kernel(%arg0: i32, %arg1: i32, %arg2: memref<1x8x128xf32, #tpu.memory_space<vmem>>, %arg3: memref<1x128x128xf32, #tpu.memory_space<vmem>>, %arg4: memref<1x128x128xf32, #tpu.memory_space<vmem>>, %arg5: memref<128x128xf32, #tpu.memory_space<vmem>>, %arg6: memref<1x1x128xf32, #tpu.memory_space<vmem>>, %arg7: memref<1x8x128xf32, #tpu.memory_space<vmem>>) attributes {dimension_semantics = [#tpu.dimension_semantics<parallel>, #tpu.dimension_semantics<parallel>], iteration_bounds = array<i64: 2, 1>, scalar_prefetch = 0 : i64, scratch_operands = 0 : i64, tpu.core_type = #tpu.core_type<tc>, window_params = [{transform_indices = @transform_0, window_bounds = array<i64: 1, 8, 128>}, {transform_indices = @transform_1, window_bounds = array<i64: 1, 128, 128>}, {transform_indices = @transform_2, window_bounds = array<i64: 1, 128, 128>}, {pipeline_mode = #tpu.pipeline_mode<synchronous>, transform_indices = @transform_3, window_bounds = array<i64: 128, 128>}, {transform_indices = @transform_4, window_bounds = array<i64: 1, 1, 128>}, {transform_indices = @transform_5, window_bounds = array<i64: 1, 8, 128>}]} {
    %c0 = arith.constant 0 : index
    %c0_0 = arith.constant 0 : index
    %c0_1 = arith.constant 0 : index
    %0 = vector.load %arg2[%c0, %c0_0, %c0_1] : memref<1x8x128xf32, #tpu.memory_space<vmem>>, vector<1x8x128xf32>
    %1 = vector.shape_cast %0 : vector<1x8x128xf32> to vector<8x128xf32>
    %c0_2 = arith.constant 0 : index
    %c0_3 = arith.constant 0 : index
    %2 = vector.load %arg5[%c0_2, %c0_3] : memref<128x128xf32, #tpu.memory_space<vmem>>, vector<128x128xf32>
    %cst = arith.constant dense<0.000000e+00> : vector<8x128xf32>
    %3 = tpu.matmul %1, %2, %cst {dimension_numbers = #tpu.dot_dimension_numbers<[1], [0], [0], [1], [0, 0, 1, 1], [], []>} : vector<8x128xf32>, vector<128x128xf32>, vector<8x128xf32> -> vector<8x128xf32>
    %cst_4 = arith.constant 0.000000e+00 : f32
    %4 = vector.broadcast %cst_4 : f32 to vector<8x128xf32>
    %5 = arith.maximumf %3, %4 : vector<8x128xf32>
    %c0_5 = arith.constant 0 : index
    %c0_6 = arith.constant 0 : index
    %c0_7 = arith.constant 0 : index
    %6 = vector.load %arg3[%c0_5, %c0_6, %c0_7] : memref<1x128x128xf32, #tpu.memory_space<vmem>>, vector<1x128x128xf32>
    %7 = vector.shape_cast %6 : vector<1x128x128xf32> to vector<128x128xf32>
    %cst_8 = arith.constant dense<0.000000e+00> : vector<8x128xf32>
    %8 = tpu.matmul %5, %7, %cst_8 {dimension_numbers = #tpu.dot_dimension_numbers<[1], [1], [0], [0], [0, 0, 1, 0], [], []>} : vector<8x128xf32>, vector<128x128xf32>, vector<8x128xf32> -> vector<8x128xf32>
    %c0_9 = arith.constant 0 : index
    %c0_10 = arith.constant 0 : index
    %c0_11 = arith.constant 0 : index
    %9 = vector.load %arg6[%c0_9, %c0_10, %c0_11] : memref<1x1x128xf32, #tpu.memory_space<vmem>>, vector<1x1x128xf32>
    %10 = vector.shape_cast %9 : vector<1x1x128xf32> to vector<1x128xf32>
    %11 = vector.broadcast %10 : vector<1x128xf32> to vector<8x128xf32>
    %12 = arith.addf %8, %11 : vector<8x128xf32>
    %cst_12 = arith.constant dense<0xFF800000> : vector<8xf32>
    %13 = vector.multi_reduction <maximumf>, %12, %cst_12 [1] : vector<8x128xf32> to vector<8xf32>
    %14 = vector.shape_cast %13 : vector<8xf32> to vector<8x1xf32>
    %15 = vector.broadcast %14 : vector<8x1xf32> to vector<8x128xf32>
    %16 = arith.subf %12, %15 : vector<8x128xf32>
    %17 = math.exp %16 : vector<8x128xf32>
    %cst_13 = arith.constant dense<0.000000e+00> : vector<8xf32>
    %18 = vector.multi_reduction <add>, %17, %cst_13 [1] : vector<8x128xf32> to vector<8xf32>
    %19 = vector.shape_cast %18 : vector<8xf32> to vector<8x1xf32>
    %c0_14 = arith.constant 0 : index
    %c0_15 = arith.constant 0 : index
    %c0_16 = arith.constant 0 : index
    %20 = vector.load %arg4[%c0_14, %c0_15, %c0_16] : memref<1x128x128xf32, #tpu.memory_space<vmem>>, vector<1x128x128xf32>
    %21 = vector.shape_cast %20 : vector<1x128x128xf32> to vector<128x128xf32>
    %cst_17 = arith.constant dense<0.000000e+00> : vector<8x128xf32>
    %22 = tpu.matmul %17, %21, %cst_17 {dimension_numbers = #tpu.dot_dimension_numbers<[1], [0], [0], [1], [0, 0, 1, 1], [], []>} : vector<8x128xf32>, vector<128x128xf32>, vector<8x128xf32> -> vector<8x128xf32>
    %cst_18 = arith.constant 1.000000e+00 : f32
    %23 = vector.broadcast %cst_18 : f32 to vector<8x1xf32>
    %24 = arith.divf %23, %19 : vector<8x1xf32>
    %25 = vector.broadcast %24 : vector<8x1xf32> to vector<8x128xf32>
    %26 = arith.mulf %22, %25 : vector<8x128xf32>
    %c0_19 = arith.constant 0 : index
    %c0_20 = arith.constant 0 : index
    %c0_21 = arith.constant 0 : index
    %27 = vector.load %arg7[%c0_19, %c0_20, %c0_21] : memref<1x8x128xf32, #tpu.memory_space<vmem>>, vector<1x8x128xf32>
    %28 = vector.shape_cast %27 : vector<1x8x128xf32> to vector<8x128xf32>
    %29 = vector.shape_cast %26 : vector<8x128xf32> to vector<1x8x128xf32>
    tpu.vector_store %arg7[%c0_19, %c0_20, %c0_21], %29 {strides = array<i32>} : memref<1x8x128xf32, #tpu.memory_space<vmem>>, vector<1x8x128xf32>,
    return
  }
  func.func @transform_0(%arg0: i32, %arg1: i32) -> (i32, i32, i32) {
    %c0_i32 = arith.constant 0 : i32
    %c0_i32_0 = arith.constant 0 : i32
    return %arg0, %arg1, %c0_i32 : i32, i32, i32
  }
  func.func @transform_1(%arg0: i32, %arg1: i32) -> (i32, i32, i32) {
    %c0_i32 = arith.constant 0 : i32
    %c0_i32_0 = arith.constant 0 : i32
    %c0_i32_1 = arith.constant 0 : i32
    return %arg0, %c0_i32, %c0_i32_0 : i32, i32, i32
  }
  func.func @transform_2(%arg0: i32, %arg1: i32) -> (i32, i32, i32) {
    %c0_i32 = arith.constant 0 : i32
    %c0_i32_0 = arith.constant 0 : i32
    %c0_i32_1 = arith.constant 0 : i32
    return %arg0, %c0_i32, %c0_i32_0 : i32, i32, i32
  }
  func.func @transform_3(%arg0: i32, %arg1: i32) -> (i32, i32) {
    %c0_i32 = arith.constant 0 : i32
    %c0_i32_0 = arith.constant 0 : i32
    %c0_i32_1 = arith.constant 0 : i32
    return %c0_i32, %c0_i32_0 : i32, i32
  }
  func.func @transform_4(%arg0: i32, %arg1: i32) -> (i32, i32, i32) {
    %c0_i32 = arith.constant 0 : i32
    %c0_i32_0 = arith.constant 0 : i32
    %c0_i32_1 = arith.constant 0 : i32
    return %arg0, %c0_i32, %c0_i32_0 : i32, i32, i32
  }
  func.func @transform_5(%arg0: i32, %arg1: i32) -> (i32, i32, i32) {
    %c0_i32 = arith.constant 0 : i32
    %c0_i32_0 = arith.constant 0 : i32
    return %arg0, %arg1, %c0_i32 : i32, i32, i32
  }
}

module attributes {stable_mosaic.version = 11 : i64} {
  func.func @_fused_attention_kernel(%arg0: i32, %arg1: i32, %arg2: memref<1x8x128xf32, #tpu.memory_space<vmem>>, %arg3: memref<1x128x128xf32, #tpu.memory_space<vmem>>, %arg4: memref<1x128x128xf32, #tpu.memory_space<vmem>>, %arg5: memref<128x128xf32, #tpu.memory_space<vmem>>, %arg6: memref<1x1x128xf32, #tpu.memory_space<vmem>>, %arg7: memref<1x8x128xf32, #tpu.memory_space<vmem>>) attributes {dimension_semantics = [#tpu.dimension_semantics<parallel>, #tpu.dimension_semantics<parallel>], iteration_bounds = array<i64: 2, 1>, scalar_prefetch = 0 : i64, scratch_operands = 0 : i64, tpu.core_type = #tpu.core_type<tc>, window_params = [{transform_indices = @transform_0, window_bounds = array<i64: 1, 8, 128>}, {transform_indices = @transform_1, window_bounds = array<i64: 1, 128, 128>}, {transform_indices = @transform_2, window_bounds = array<i64: 1, 128, 128>}, {pipeline_mode = #tpu.pipeline_mode<synchronous>, transform_indices = @transform_3, window_bounds = array<i64: 128, 128>}, {transform_indices = @transform_4, window_bounds = array<i64: 1, 1, 128>}, {transform_indices = @transform_5, window_bounds = array<i64: 1, 8, 128>}]} {
    %c0 = arith.constant 0 : index
    %c0_0 = arith.constant 0 : index
    %c0_1 = arith.constant 0 : index
    %0 = vector.load %arg2[%c0, %c0_0, %c0_1] : memref<1x8x128xf32, #tpu.memory_space<vmem>>, vector<1x8x128xf32>
    %1 = vector.shape_cast %0 : vector<1x8x128xf32> to vector<8x128xf32>
    %c0_2 = arith.constant 0 : index
    %c0_3 = arith.constant 0 : index
    %2 = vector.load %arg5[%c0_2, %c0_3] : memref<128x128xf32, #tpu.memory_space<vmem>>, vector<128x128xf32>
    %cst = arith.constant dense<0.000000e+00> : vector<8x128xf32>
    %3 = tpu.matmul %1, %2, %cst {dimension_numbers = #tpu.dot_dimension_numbers<[1], [0], [0], [1], [0, 0, 1, 1], [], []>} : vector<8x128xf32>, vector<128x128xf32>, vector<8x128xf32> -> vector<8x128xf32>
    %cst_4 = arith.constant 0.000000e+00 : f32
    %4 = vector.broadcast %cst_4 : f32 to vector<8x128xf32>
    %5 = arith.maximumf %3, %4 : vector<8x128xf32>
    %c0_5 = arith.constant 0 : index
    %c0_6 = arith.constant 0 : index
    %c0_7 = arith.constant 0 : index
    %6 = vector.load %arg3[%c0_5, %c0_6, %c0_7] : memref<1x128x128xf32, #tpu.memory_space<vmem>>, vector<1x128x128xf32>
    %7 = vector.shape_cast %6 : vector<1x128x128xf32> to vector<128x128xf32>
    %cst_8 = arith.constant dense<0.000000e+00> : vector<8x128xf32>
    %8 = tpu.matmul %5, %7, %cst_8 {dimension_numbers = #tpu.dot_dimension_numbers<[1], [1], [0], [0], [0, 0, 1, 0], [], []>} : vector<8x128xf32>, vector<128x128xf32>, vector<8x128xf32> -> vector<8x128xf32>
    %c0_9 = arith.constant 0 : index
    %c0_10 = arith.constant 0 : index
    %c0_11 = arith.constant 0 : index
    %9 = vector.load %arg6[%c0_9, %c0_10, %c0_11] : memref<1x1x128xf32, #tpu.memory_space<vmem>>, vector<1x1x128xf32>
    %10 = vector.shape_cast %9 : vector<1x1x128xf32> to vector<1x128xf32>
    %11 = vector.broadcast %10 : vector<1x128xf32> to vector<8x128xf32>
    %12 = arith.addf %8, %11 : vector<8x128xf32>
    %cst_12 = arith.constant dense<0xFF800000> : vector<8xf32>
    %13 = vector.multi_reduction <maximumf>, %12, %cst_12 [1] : vector<8x128xf32> to vector<8xf32>
    %14 = vector.shape_cast %13 : vector<8xf32> to vector<8x1xf32>
    %15 = vector.broadcast %14 : vector<8x1xf32> to vector<8x128xf32>
    %16 = arith.subf %12, %15 : vector<8x128xf32>
    %17 = math.exp %16 : vector<8x128xf32>
    %cst_13 = arith.constant dense<0.000000e+00> : vector<8xf32>
    %18 = vector.multi_reduction <add>, %17, %cst_13 [1] : vector<8x128xf32> to vector<8xf32>
    %19 = vector.shape_cast %18 : vector<8xf32> to vector<8x1xf32>
    %c0_14 = arith.constant 0 : index
    %c0_15 = arith.constant 0 : index
    %c0_16 = arith.constant 0 : index
    %20 = vector.load %arg4[%c0_14, %c0_15, %c0_16] : memref<1x128x128xf32, #tpu.memory_space<vmem>>, vector<1x128x128xf32>
    %21 = vector.shape_cast %20 : vector<1x128x128xf32> to vector<128x128xf32>
    %cst_17 = arith.constant dense<0.000000e+00> : vector<8x128xf32>
    %22 = tpu.matmul %17, %21, %cst_17 {dimension_numbers = #tpu.dot_dimension_numbers<[1], [0], [0], [1], [0, 0, 1, 1], [], []>} : vector<8x128xf32>, vector<128x128xf32>, vector<8x128xf32> -> vector<8x128xf32>
    %cst_18 = arith.constant 1.000000e+00 : f32
    %23 = vector.broadcast %cst_18 : f32 to vector<8x1xf32>
    %24 = arith.divf %23, %19 : vector<8x1xf32>
    %25 = vector.broadcast %24 : vector<8x1xf32> to vector<8x128xf32>
    %26 = arith.mulf %22, %25 : vector<8x128xf32>
    %c0_19 = arith.constant 0 : index
    %c0_20 = arith.constant 0 : index
    %c0_21 = arith.constant 0 : index
    %27 = vector.load %arg7[%c0_19, %c0_20, %c0_21] : memref<1x8x128xf32, #tpu.memory_space<vmem>>, vector<1x8x128xf32>
    %28 = vector.shape_cast %27 : vector<1x8x128xf32> to vector<8x128xf32>
    %29 = vector.shape_cast %26 : vector<8x128xf32> to vector<1x8x128xf32>
    tpu.vector_store %arg7[%c0_19, %c0_20, %c0_21], %29 {strides = array<i32>} : memref<1x8x128xf32, #tpu.memory_space<vmem>>, vector<1x8x128xf32>,
    return
  }
  func.func @transform_0(%arg0: i32, %arg1: i32) -> (i32, i32, i32) {
    %c0_i32 = arith.constant 0 : i32
    %c0_i32_0 = arith.constant 0 : i32
    return %arg0, %arg1, %c0_i32 : i32, i32, i32
  }
  func.func @transform_1(%arg0: i32, %arg1: i32) -> (i32, i32, i32) {
    %c0_i32 = arith.constant 0 : i32
    %c0_i32_0 = arith.constant 0 : i32
    %c0_i32_1 = arith.constant 0 : i32
    return %arg0, %c0_i32, %c0_i32_0 : i32, i32, i32
  }
  func.func @transform_2(%arg0: i32, %arg1: i32) -> (i32, i32, i32) {
    %c0_i32 = arith.constant 0 : i32
    %c0_i32_0 = arith.constant 0 : i32
    %c0_i32_1 = arith.constant 0 : i32
    return %arg0, %c0_i32, %c0_i32_0 : i32, i32, i32
  }
  func.func @transform_3(%arg0: i32, %arg1: i32) -> (i32, i32) {
    %c0_i32 = arith.constant 0 : i32
    %c0_i32_0 = arith.constant 0 : i32
    %c0_i32_1 = arith.constant 0 : i32
    return %c0_i32, %c0_i32_0 : i32, i32
  }
  func.func @transform_4(%arg0: i32, %arg1: i32) -> (i32, i32, i32) {
    %c0_i32 = arith.constant 0 : i32
    %c0_i32_0 = arith.constant 0 : i32
    %c0_i32_1 = arith.constant 0 : i32
    return %arg0, %c0_i32, %c0_i32_0 : i32, i32, i32
  }
  func.func @transform_5(%arg0: i32, %arg1: i32) -> (i32, i32, i32) {
    %c0_i32 = arith.constant 0 : i32
    %c0_i32_0 = arith.constant 0 : i32
    return %arg0, %arg1, %c0_i32 : i32, i32, i32
  }
}

</mosaic_0001>

<llo_original>
// kernel: tpu_custom_call.1
$region0: #{tpu_custom_call.1}
  #allocation0 [shape = 'u32[]', space=smem, size = 0x4, offset = 0x4, fixed_abs, tag = 'smem constant byte address 0x4 - core index']
  #allocation1 [shape = 'u32[144,128]{1,0:T(1,128)}', space=vmem, size = 0x12000, scoped, tag = 'internal scratch']
  %s0 = inlined_call_operand.hbm [shape: f32[2,8,128], index: 0, kind: input, shape index: {}]
  %s1 = inlined_call_operand.hbm [shape: f32[2,128,128], index: 1, kind: input, shape index: {}]
  %s2 = inlined_call_operand.hbm [shape: f32[2,128,128], index: 2, kind: input, shape index: {}]
  %s3 = inlined_call_operand.hbm [shape: f32[128,128], index: 3, kind: input, shape index: {}]
  %s4 = inlined_call_operand.vmem [shape: f32[2,1,128], index: 4, kind: input, shape index: {}]
  %s5 = inlined_call_operand.hbm [shape: f32[2,8,128], index: 5, kind: output, shape index: {}]
  %s6 = sld [smem:[#allocation0]]
  $region69: #{tpu_custom_call.1} parent=0
    _
  %s8 = ssub.s32 1, %s6
  %s9 = scalar_select 0, %s8, %s6
  $region1: #{tpu_custom_call.1} parent=0
    #allocation2 [shape = 'u8[8192]{0}', space=vmem, size = 0x2000, scoped, tag = 'input window, operand 0']
    #allocation3 [shape = 's32[2]{0}', space=sflag, size = 0x8, scoped, tag = 'scoped memory for tpu_custom_call.1']
    #allocation4 [shape = 's32[2]{0}', space=sflag, size = 0x8, scoped, tag = 'scoped memory for tpu_custom_call.1']
    #allocation5 [shape = 'u8[131072]{0}', space=vmem, size = 0x20000, scoped, tag = 'input window, operand 1']
    #allocation6 [shape = 's32[2]{0}', space=sflag, size = 0x8, scoped, tag = 'scoped memory for tpu_custom_call.1']
    #allocation7 [shape = 'u8[131072]{0}', space=vmem, size = 0x20000, scoped, tag = 'input window, operand 2']
    #allocation8 [shape = 'u8[65536]{0}', space=vmem, size = 0x10000, scoped, tag = 'input window, operand 3, single buffered']
    #allocation9 [shape = 's32[1]{0}', space=sflag, size = 0x4, scoped, tag = 'scoped memory for tpu_custom_call.1']
    #allocation10 [shape = 'u8[8192]{0}', space=vmem, size = 0x2000, scoped, tag = 'output window, operand 0']
    %10 = vsyncpa [#allocation3], 0
    %s11 = scalar_lea.sflag [#allocation3], 1
    %12 = vsyncpa %s11, 0
    %13 = vsyncpa [#allocation6], 0
    %s14 = scalar_lea.sflag [#allocation6], 1
    %15 = vsyncpa %s14, 0
    %16 = vsyncpa [#allocation9], 0
    %17 = vsyncpa [#allocation4], 0
    %s18 = scalar_lea.sflag [#allocation4], 1
    %19 = vsyncpa %s18, 0
    loop: start=0, step=1, limit=4
    $region2: #{tpu_custom_call.1} parent=1 // loop_pre_header
      _
    $region3: #{tpu_custom_call.1} parent=1 // loop_header
      %s21 = sphi 0, %s25
      %p22 = scmp.ge.s32.totalorder %s21, 4
      %s28 = sphi 0, %s40
      %s29 = sphi 0, %s36
      %s30 = sphi 0, %s28
      %s31 = sphi 0, %s29
      %s32 = sphi 0, %s30
      %s33 = sphi 0, %s31
      %s45 = sphi 0, %s47
      %s48 = sphi 0, %s45
      %s49 = sphi 0, %s48
      %s65 = sphi 0, %s49
      %s71 = sphi 0, %s73
      %s74 = sphi 0, %s71
      %s75 = sphi 0, %s74
      %s91 = sphi 0, %s75
      %s97 = sphi 0, %s99
      %s100 = sphi 0, %s97
      %s101 = sphi 0, %s100
      %s117 = sphi 0, %s101
      %s121 = sphi 0, %s121
      %s123 = sphi 0, %s121
      %s124 = sphi 0, %s123
      %s138 = sphi 0, %s124
      %s144 = sphi 0, %s146
      %s147 = sphi 0, %s144
      %s148 = sphi 0, %s147
      %s164 = sphi 0, %s148
      %s172 = sphi 0, %s174
      %s175 = sphi 0, %s172
      %s176 = sphi 0, %s175
      %s192 = sphi 0, %s176
    $region4: #{tpu_custom_call.1} parent=1 // loop_header_branch
      %24 = sbr.rel (%p22) target = $region8
    $region5: #{tpu_custom_call.1} parent=1 // loop_body
      %s26 = ssub.s32 %s21, 1
      %s27 = ssub.s32 %s21, 2
      %s34 = sadd.s32 1, %s29
      %p35 = scmp.ge.s32.totalorder %s34, 1
      %s36 = scalar_select %p35, 0, %s34
      %s37 = sadd.s32 1, %s28
      %s38 = scalar_select %p35, %s37, %s28
      %p39 = scmp.ge.s32.totalorder %s38, 2
      %s40 = scalar_select %p39, 0, %s38
      %s41 = ssub.s32 %s28, %s40
      %s42 = ssub.s32 %s29, %s36
      %s43 = sor.u32 %s41, %s42
      %p44 = scmp.eq.s32.totalorder %s43, 0
      %s46 = sadd.s32 %s45, 1
      %s47 = scalar_select %p44, %s45, %s46
      %p50 = pneg %p44
      %p51 = scmp.eq.s32.totalorder %s21, 1
      %p52 = por %p50, %p51
      %p53 = scmp.ne.s32.totalorder %s45, %s48
      %p54 = scmp.eq.s32.totalorder %s21, 0
      %p55 = por %p53, %p54
      %p56 = scmp.ne.s32.totalorder %s45, %s48
      %p57 = scmp.eq.s32.totalorder %s26, 1
      %p58 = por %p56, %p57
      %p59 = scmp.ne.s32.totalorder %s48, %s49
      %p60 = scmp.eq.s32.totalorder %s26, 0
      %p61 = por %p59, %p60
      %p62 = scmp.ne.s32.totalorder %s48, %s49
      %p63 = scmp.eq.s32.totalorder %s27, 1
      %p64 = por %p62, %p63
      %p66 = scmp.ne.s32.totalorder %s49, %s65
      %p67 = scmp.eq.s32.totalorder %s27, 0
      %p68 = por %p66, %p67
      %s69 = ssub.s32 %s28, %s40
      %p70 = scmp.eq.s32.totalorder %s69, 0
      %s72 = sadd.s32 %s71, 1
      %s73 = scalar_select %p70, %s71, %s72
      %p76 = pneg %p70
      %p77 = scmp.eq.s32.totalorder %s21, 1
      %p78 = por %p76, %p77
      %p79 = scmp.ne.s32.totalorder %s71, %s74
      %p80 = scmp.eq.s32.totalorder %s21, 0
      %p81 = por %p79, %p80
      %p82 = scmp.ne.s32.totalorder %s71, %s74
      %p83 = scmp.eq.s32.totalorder %s26, 1
      %p84 = por %p82, %p83
      %p85 = scmp.ne.s32.totalorder %s74, %s75
      %p86 = scmp.eq.s32.totalorder %s26, 0
      %p87 = por %p85, %p86
      %p88 = scmp.ne.s32.totalorder %s74, %s75
      %p89 = scmp.eq.s32.totalorder %s27, 1
      %p90 = por %p88, %p89
      %p92 = scmp.ne.s32.totalorder %s75, %s91
      %p93 = scmp.eq.s32.totalorder %s27, 0
      %p94 = por %p92, %p93
      %s95 = ssub.s32 %s28, %s40
      %p96 = scmp.eq.s32.totalorder %s95, 0
      %s98 = sadd.s32 %s97, 1
      %s99 = scalar_select %p96, %s97, %s98
      %p102 = pneg %p96
      %p103 = scmp.eq.s32.totalorder %s21, 1
      %p104 = por %p102, %p103
      %p105 = scmp.ne.s32.totalorder %s97, %s100
      %p106 = scmp.eq.s32.totalorder %s21, 0
      %p107 = por %p105, %p106
      %p108 = scmp.ne.s32.totalorder %s97, %s100
      %p109 = scmp.eq.s32.totalorder %s26, 1
      %p110 = por %p108, %p109
      %p111 = scmp.ne.s32.totalorder %s100, %s101
      %p112 = scmp.eq.s32.totalorder %s26, 0
      %p113 = por %p111, %p112
      %p114 = scmp.ne.s32.totalorder %s100, %s101
      %p115 = scmp.eq.s32.totalorder %s27, 1
      %p116 = por %p114, %p115
      %p118 = scmp.ne.s32.totalorder %s101, %s117
      %p119 = scmp.eq.s32.totalorder %s27, 0
      %p120 = por %p118, %p119
      %s122 = sadd.s32 %s121, 1
      %p125 = scmp.eq.s32.totalorder %s21, 1
      %p126 = scmp.ne.s32.totalorder %s121, %s123
      %p127 = scmp.eq.s32.totalorder %s21, 0
      %p128 = por %p126, %p127
      %p129 = scmp.ne.s32.totalorder %s121, %s123
      %p130 = scmp.eq.s32.totalorder %s26, 1
      %p131 = por %p129, %p130
      %p132 = scmp.ne.s32.totalorder %s123, %s124
      %p133 = scmp.eq.s32.totalorder %s26, 0
      %p134 = por %p132, %p133
      %p135 = scmp.ne.s32.totalorder %s123, %s124
      %p136 = scmp.eq.s32.totalorder %s27, 1
      %p137 = por %p135, %p136
      %p139 = scmp.ne.s32.totalorder %s124, %s138
      %p140 = scmp.eq.s32.totalorder %s27, 0
      %p141 = por %p139, %p140
      %s142 = ssub.s32 %s28, %s40
      %p143 = scmp.eq.s32.totalorder %s142, 0
      %s145 = sadd.s32 %s144, 1
      %s146 = scalar_select %p143, %s144, %s145
      %p149 = pneg %p143
      %p150 = scmp.eq.s32.totalorder %s21, 1
      %p151 = por %p149, %p150
      %p152 = scmp.ne.s32.totalorder %s144, %s147
      %p153 = scmp.eq.s32.totalorder %s21, 0
      %p154 = por %p152, %p153
      %p155 = scmp.ne.s32.totalorder %s144, %s147
      %p156 = scmp.eq.s32.totalorder %s26, 1
      %p157 = por %p155, %p156
      %p158 = scmp.ne.s32.totalorder %s147, %s148
      %p159 = scmp.eq.s32.totalorder %s26, 0
      %p160 = por %p158, %p159
      %p161 = scmp.ne.s32.totalorder %s147, %s148
      %p162 = scmp.eq.s32.totalorder %s27, 1
      %p163 = por %p161, %p162
      %p165 = scmp.ne.s32.totalorder %s148, %s164
      %p166 = scmp.eq.s32.totalorder %s27, 0
      %p167 = por %p165, %p166
      %s168 = ssub.s32 %s28, %s40
      %s169 = ssub.s32 %s29, %s36
      %s170 = sor.u32 %s168, %s169
      %p171 = scmp.eq.s32.totalorder %s170, 0
      %s173 = sadd.s32 %s172, 1
      %s174 = scalar_select %p171, %s172, %s173
      %p177 = pneg %p171
      %p178 = scmp.eq.s32.totalorder %s21, 1
      %p179 = por %p177, %p178
      %p180 = scmp.ne.s32.totalorder %s172, %s175
      %p181 = scmp.eq.s32.totalorder %s21, 0
      %p182 = por %p180, %p181
      %p183 = scmp.ne.s32.totalorder %s172, %s175
      %p184 = scmp.eq.s32.totalorder %s26, 1
      %p185 = por %p183, %p184
      %p186 = scmp.ne.s32.totalorder %s175, %s176
      %p187 = scmp.eq.s32.totalorder %s26, 0
      %p188 = por %p186, %p187
      %p189 = scmp.ne.s32.totalorder %s175, %s176
      %p190 = scmp.eq.s32.totalorder %s27, 1
      %p191 = por %p189, %p190
      %p193 = scmp.ne.s32.totalorder %s176, %s192
      %p194 = scmp.eq.s32.totalorder %s27, 0
      %p195 = por %p193, %p194
      %p196 = scmp.le.s32.totalorder 1, %s21
      %p197 = scmp.lt.s32.totalorder %s21, 3
      %p198 = pnand %p196, %p197
      %p199 = pneg %p198
      // Predicated region
      $region9: #{tpu_custom_call.1} parent=5 // pred_check
        _
      $region10: #{tpu_custom_call.1} parent=5 // pred_check_branch
        %201 = sbr.rel (%p198) target = $region12
      $region11: #{tpu_custom_call.1} parent=5 // pred_region
        %s202 = ssub.s32 %s21, 1
        // Predicated region
        $region13: #{tpu_custom_call.1} parent=11 // pred_check
          %p203 = pneg %p134
        $region14: #{tpu_custom_call.1} parent=11 // pred_check_branch
          %205 = sbr.rel (%p203) target = $region16
        $region15: #{tpu_custom_call.1} parent=11 // pred_region
          %s207 = ssub.s32 2048, 2048
          %208 = vsyncadd [#allocation9], %s207
          %s209 = sshll.u32 [#allocation8], 4
          %s210 = int_to_ptr.vmem [resolvable:$true] %s209
          %215 = dma.hbm_to_vmem [thread:$0]  %s3, 2048, %s210, [#allocation9], 128, 128, 8
        $region16: #{tpu_custom_call.1} parent=11 // pred_fallthru
          _
      $region12: #{tpu_custom_call.1} parent=5 // pred_fallthru
        _
      %p216 = scmp.lt.s32.totalorder %s21, 2
      // Predicated region
      $region17: #{tpu_custom_call.1} parent=5 // pred_check
        %p217 = pneg %p216
      $region18: #{tpu_custom_call.1} parent=5 // pred_check_branch
        %219 = sbr.rel (%p217) target = $region20
      $region19: #{tpu_custom_call.1} parent=5 // pred_region
        // Predicated region
        $region21: #{tpu_custom_call.1} parent=19 // pred_check
          %p220 = pneg %p55
        $region22: #{tpu_custom_call.1} parent=19 // pred_check_branch
          %222 = sbr.rel (%p220) target = $region24
        $region23: #{tpu_custom_call.1} parent=19 // pred_region
          %s223 = sand.u32 %s45, 1
          %s224 = scalar_lea.sflag [#allocation3], %s223
          %s225 = sand.u32 %s45, 1
          %s226 = smul.addr %s225, 8
          %s227 = scalar_lea.vmem [#allocation2], %s226
          %s229 = ssub.s32 128, 128
          %230 = vsyncadd %s224, %s229
          %s231 = sadd.s32 %s29, %s28
          %s232 = smul.addr %s231, 128
          %s233 = scalar_lea.hbm %s0, %s232
          %s235 = sshll.u32 %s227, 4
          %s236 = int_to_ptr.vmem [resolvable:$true] %s235
          %238 = dma.hbm_to_vmem [thread:$0]  %s233, 128, %s236, %s224
        $region24: #{tpu_custom_call.1} parent=19 // pred_fallthru
          _
        // Predicated region
        $region25: #{tpu_custom_call.1} parent=19 // pred_check
          %p239 = pneg %p81
        $region26: #{tpu_custom_call.1} parent=19 // pred_check_branch
          %241 = sbr.rel (%p239) target = $region28
        $region27: #{tpu_custom_call.1} parent=19 // pred_region
          %s242 = sand.u32 %s21, 1
          %s243 = scalar_lea.sflag [#allocation6], %s242
          %s244 = sand.u32 %s71, 1
          %s245 = smul.addr %s244, 128
          %s246 = scalar_lea.vmem [#allocation5], %s245
          %s248 = ssub.s32 2048, 2048
          %249 = vsyncadd %s243, %s248
          %s250 = smul.addr %s28, 16
          %s251 = smul.addr %s250, 128
          %s252 = scalar_lea.hbm %s1, %s251
          %s253 = sshll.u32 %s246, 4
          %s254 = int_to_ptr.vmem [resolvable:$true] %s253
          %259 = dma.hbm_to_vmem [thread:$0]  %s252, 2048, %s254, %s243, 128, 128, 8
        $region28: #{tpu_custom_call.1} parent=19 // pred_fallthru
          _
        // Predicated region
        $region29: #{tpu_custom_call.1} parent=19 // pred_check
          %p260 = pneg %p107
        $region30: #{tpu_custom_call.1} parent=19 // pred_check_branch
          %262 = sbr.rel (%p260) target = $region32
        $region31: #{tpu_custom_call.1} parent=19 // pred_region
          %s263 = sand.u32 %s21, 1
          %s264 = scalar_lea.sflag [#allocation6], %s263
          %s265 = sand.u32 %s97, 1
          %s266 = smul.addr %s265, 128
          %s267 = scalar_lea.vmem [#allocation7], %s266
          %s269 = ssub.s32 2048, 2048
          %270 = vsyncadd %s264, %s269
          %s271 = smul.addr %s28, 16
          %s272 = smul.addr %s271, 128
          %s273 = scalar_lea.hbm %s2, %s272
          %s274 = sshll.u32 %s267, 4
          %s275 = int_to_ptr.vmem [resolvable:$true] %s274
          %280 = dma.hbm_to_vmem [thread:$0]  %s273, 2048, %s275, %s264, 128, 128, 8
        $region32: #{tpu_custom_call.1} parent=19 // pred_fallthru
          _
        // Predicated region
        $region33: #{tpu_custom_call.1} parent=19 // pred_check
          %p281 = pneg %p154
        $region34: #{tpu_custom_call.1} parent=19 // pred_check_branch
          %283 = sbr.rel (%p281) target = $region36
        $region35: #{tpu_custom_call.1} parent=19 // pred_region
          %p284 = scmp.lt.s32.totalorder %s28, 1
          %s285 = scalar_select %p284, %s28, 1
          %s286 = scalar_lea.vmem %s4, %s285
        $region36: #{tpu_custom_call.1} parent=19 // pred_fallthru
          _
      $region20: #{tpu_custom_call.1} parent=5 // pred_fallthru
        _
      %p287 = scmp.le.s32.totalorder 1, %s21
      %p288 = scmp.lt.s32.totalorder %s21, 3
      %p289 = pnand %p287, %p288
      %p290 = pneg %p289
      // Predicated region
      $region37: #{tpu_custom_call.1} parent=5 // pred_check
        _
      $region38: #{tpu_custom_call.1} parent=5 // pred_check_branch
        %292 = sbr.rel (%p289) target = $region40
      $region39: #{tpu_custom_call.1} parent=5 // pred_region
        %s293 = ssub.s32 %s21, 1
        %s294 = sand.u32 %s48, 1
        %s295 = scalar_lea.sflag [#allocation3], %s294
        %s296 = sand.u32 %s48, 1
        %s297 = smul.addr %s296, 8
        %s298 = scalar_lea.vmem [#allocation2], %s297
        // Predicated region
        $region41: #{tpu_custom_call.1} parent=39 // pred_check
          %p299 = pneg %p61
        $region42: #{tpu_custom_call.1} parent=39 // pred_check_branch
          %301 = sbr.rel (%p299) target = $region44
        $region43: #{tpu_custom_call.1} parent=39 // pred_region
          %302 = dma.done %s295, 128
        $region44: #{tpu_custom_call.1} parent=39 // pred_fallthru
          _
        %s303 = sand.u32 %s26, 1
        %s304 = scalar_lea.sflag [#allocation6], %s303
        %s305 = sand.u32 %s74, 1
        %s306 = smul.addr %s305, 128
        %s307 = scalar_lea.vmem [#allocation5], %s306
        // Predicated region
        $region45: #{tpu_custom_call.1} parent=39 // pred_check
          %p308 = pneg %p87
        $region46: #{tpu_custom_call.1} parent=39 // pred_check_branch
          %310 = sbr.rel (%p308) target = $region48
        $region47: #{tpu_custom_call.1} parent=39 // pred_region
          %311 = dma.done %s304, 2048
        $region48: #{tpu_custom_call.1} parent=39 // pred_fallthru
          _
        %s312 = sand.u32 %s26, 1
        %s313 = scalar_lea.sflag [#allocation6], %s312
        %s314 = sand.u32 %s100, 1
        %s315 = smul.addr %s314, 128
        %s316 = scalar_lea.vmem [#allocation7], %s315
        // Predicated region
        $region49: #{tpu_custom_call.1} parent=39 // pred_check
          %p317 = pneg %p113
        $region50: #{tpu_custom_call.1} parent=39 // pred_check_branch
          %319 = sbr.rel (%p317) target = $region52
        $region51: #{tpu_custom_call.1} parent=39 // pred_region
          %320 = dma.done %s313, 2048
        $region52: #{tpu_custom_call.1} parent=39 // pred_fallthru
          _
        // Predicated region
        $region53: #{tpu_custom_call.1} parent=39 // pred_check
          %p321 = pneg %p134
        $region54: #{tpu_custom_call.1} parent=39 // pred_check_branch
          %323 = sbr.rel (%p321) target = $region56
        $region55: #{tpu_custom_call.1} parent=39 // pred_region
          %324 = dma.done [#allocation9], 2048
        $region56: #{tpu_custom_call.1} parent=39 // pred_fallthru
          _
        %s325 = sand.u32 %s48, 1
        %s326 = scalar_lea.sflag [#allocation3], %s325
        %s327 = sand.u32 %s48, 1
        %s328 = smul.addr %s327, 8
        %s329 = scalar_lea.vmem [#allocation2], %s328
        %p330 = pneg %p61
        %p331 = pneg %p58
        %s332 = sand.u32 %s26, 1
        %s333 = scalar_lea.sflag [#allocation6], %s332
        %s334 = sand.u32 %s74, 1
        %s335 = smul.addr %s334, 128
        %s336 = scalar_lea.vmem [#allocation5], %s335
        %p337 = pneg %p87
        %p338 = pneg %p84
        %s339 = sand.u32 %s26, 1
        %s340 = scalar_lea.sflag [#allocation6], %s339
        %s341 = sand.u32 %s100, 1
        %s342 = smul.addr %s341, 128
        %s343 = scalar_lea.vmem [#allocation7], %s342
        %p344 = pneg %p113
        %p345 = pneg %p110
        %p346 = pneg %p134
        %p347 = pneg %p131
        %p348 = scmp.lt.s32.totalorder %s30, 1
        %s349 = scalar_select %p348, %s30, 1
        %s350 = scalar_lea.vmem %s4, %s349
        %p351 = pneg %p160
        %p352 = pneg %p157
        %p353 = pneg %p188
        %p354 = pneg %p185
        %s355 = sand.u32 %s175, 1
        %s356 = scalar_lea.sflag [#allocation4], %s355
        %s357 = sand.u32 %s175, 1
        %s358 = smul.addr %s357, 8
        %s359 = scalar_lea.vmem [#allocation10], %s358
        %p360 = scmp.lt.s32.totalorder %s30, 1
        %s361 = scalar_select %p360, %s30, 1
        %s362 = scalar_lea.vmem %s4, %s361
        %v363 = vld [vmem:[%s298] sm:$0xff]
        %v364 = vld [vmem:[#allocation8] sm:$0xff]
        %v365 = vld [vmem:[#allocation8 + $0x8] sm:$0xff]
        %v366 = vld [vmem:[#allocation8 + $0x10] sm:$0xff]
        %v367 = vld [vmem:[#allocation8 + $0x18] sm:$0xff]
        %v368 = vld [vmem:[#allocation8 + $0x20] sm:$0xff]
        %v369 = vld [vmem:[#allocation8 + $0x28] sm:$0xff]
        %v370 = vld [vmem:[#allocation8 + $0x30] sm:$0xff]
        %v371 = vld [vmem:[#allocation8 + $0x38] sm:$0xff]
        %v372 = vld [vmem:[#allocation8 + $0x40] sm:$0xff]
        %v373 = vld [vmem:[#allocation8 + $0x48] sm:$0xff]
        %v374 = vld [vmem:[#allocation8 + $0x50] sm:$0xff]
        %v375 = vld [vmem:[#allocation8 + $0x58] sm:$0xff]
        %v376 = vld [vmem:[#allocation8 + $0x60] sm:$0xff]
        %v377 = vld [vmem:[#allocation8 + $0x68] sm:$0xff]
        %v378 = vld [vmem:[#allocation8 + $0x70] sm:$0xff]
        %v379 = vld [vmem:[#allocation8 + $0x78] sm:$0xff]
        %380 = vmatprep.subr.mxu0 0.0
        %381 = vmatpush1.msra.mxu0 %v379
        %382 = vmatprep.subr.mxu0 0.0
        %383 = vmatpush1.msra.mxu0 %v378
        %384 = vmatprep.subr.mxu0 0.0
        %385 = vmatpush1.msra.mxu0 %v377
        %386 = vmatprep.subr.mxu0 0.0
        %387 = vmatpush1.msra.mxu0 %v376
        %388 = vmatprep.subr.mxu0 0.0
        %389 = vmatpush1.msra.mxu0 %v375
        %390 = vmatprep.subr.mxu0 0.0
        %391 = vmatpush1.msra.mxu0 %v374
        %392 = vmatprep.subr.mxu0 0.0
        %393 = vmatpush1.msra.mxu0 %v373
        %394 = vmatprep.subr.mxu0 0.0
        %395 = vmatpush1.msra.mxu0 %v372
        %396 = vmatprep.subr.mxu0 0.0
        %397 = vmatpush1.msra.mxu0 %v371
        %398 = vmatprep.subr.mxu0 0.0
        %399 = vmatpush1.msra.mxu0 %v370
        %400 = vmatprep.subr.mxu0 0.0
        %401 = vmatpush1.msra.mxu0 %v369
        %402 = vmatprep.subr.mxu0 0.0
        %403 = vmatpush1.msra.mxu0 %v368
        %404 = vmatprep.subr.mxu0 0.0
        %405 = vmatpush1.msra.mxu0 %v367
        %406 = vmatprep.subr.mxu0 0.0
        %407 = vmatpush1.msra.mxu0 %v366
        %408 = vmatprep.subr.mxu0 0.0
        %409 = vmatpush1.msra.mxu0 %v365
        %410 = vmatprep.subr.mxu0 0.0
        %411 = vmatpush1.msra.mxu0 %v364
        %412 = vmatprep.subr.mxu0 0.0
        %413 = vmatpush2.msra.mxu0 0.0
        %414 = vmatprep.subr.mxu0 0.0
        %415 = vmatpush2.msra.mxu0 0.0
        %416 = vmatprep.subr.mxu0 0.0
        %417 = vmatpush2.msra.mxu0 0.0
        %418 = vmatprep.subr.mxu0 0.0
        %419 = vmatpush2.msra.mxu0 0.0
        %420 = vmatprep.subr.mxu0 0.0
        %421 = vmatpush2.msra.mxu0 0.0
        %422 = vmatprep.subr.mxu0 0.0
        %423 = vmatpush2.msra.mxu0 0.0
        %424 = vmatprep.subr.mxu0 0.0
        %425 = vmatpush2.msra.mxu0 0.0
        %426 = vmatprep.subr.mxu0 0.0
        %427 = vmatpush2.msra.mxu0 0.0
        %428 = vmatprep.subr.mxu0 0.0
        %429 = vmatpush2.msra.mxu0 0.0
        %430 = vmatprep.subr.mxu0 0.0
        %431 = vmatpush2.msra.mxu0 0.0
        %432 = vmatprep.subr.mxu0 0.0
        %433 = vmatpush2.msra.mxu0 0.0
        %434 = vmatprep.subr.mxu0 0.0
        %435 = vmatpush2.msra.mxu0 0.0
        %436 = vmatprep.subr.mxu0 0.0
        %437 = vmatpush2.msra.mxu0 0.0
        %438 = vmatprep.subr.mxu0 0.0
        %439 = vmatpush2.msra.mxu0 0.0
        %440 = vmatprep.subr.mxu0 0.0
        %441 = vmatpush2.msra.mxu0 0.0
        %442 = vmatprep.subr.mxu0 0.0
        %443 = vmatpush2.msra.mxu0 0.0
        %444 = vmatprep.mubr.f32.mxu0 0.0
        %445 = vmatmul.mubr.f32.gmra.mxu0 %v363
        %v446 = vpop.f32.mrf.mxu0
        %v447 = vadd.f32 0.0, %v446
        %v448 = vpop.f32.mrf.mxu0
        %449 = vdwg.mxu0
        %v450 = vmax.f32 %v447, 0.0
        %v451 = vld [vmem:[%s307] sm:$0xff]
        %v452 = vld [vmem:[%s307 + $0x8] sm:$0xff]
        %v453 = vld [vmem:[%s307 + $0x10] sm:$0xff]
        %v454 = vld [vmem:[%s307 + $0x18] sm:$0xff]
        %v455 = vld [vmem:[%s307 + $0x20] sm:$0xff]
        %v456 = vld [vmem:[%s307 + $0x28] sm:$0xff]
        %v457 = vld [vmem:[%s307 + $0x30] sm:$0xff]
        %v458 = vld [vmem:[%s307 + $0x38] sm:$0xff]
        %v459 = vld [vmem:[%s307 + $0x40] sm:$0xff]
        %v460 = vld [vmem:[%s307 + $0x48] sm:$0xff]
        %v461 = vld [vmem:[%s307 + $0x50] sm:$0xff]
        %v462 = vld [vmem:[%s307 + $0x58] sm:$0xff]
        %v463 = vld [vmem:[%s307 + $0x60] sm:$0xff]
        %v464 = vld [vmem:[%s307 + $0x68] sm:$0xff]
        %v465 = vld [vmem:[%s307 + $0x70] sm:$0xff]
        %v466 = vld [vmem:[%s307 + $0x78] sm:$0xff]
        %v467 = vld [vmem:[%s362] sm:$0x1]
        %v469 = vlaneseq
        %v470 = vshrl.u32 %v469, 7
        %v471 = vsub.s32 0, %v470
        %v472 = vrot.slane %v467, %v471
        %474 = vmatprep.subr.mxu0 0.0
        %475 = vmatpush1.xpose.msra.mxu0 %v466
        %476 = vmatprep.subr.mxu0 0.0
        %477 = vmatpush1.xpose.msra.mxu0 %v465
        %478 = vmatprep.subr.mxu0 0.0
        %479 = vmatpush1.xpose.msra.mxu0 %v464
        %480 = vmatprep.subr.mxu0 0.0
        %481 = vmatpush1.xpose.msra.mxu0 %v463
        %482 = vmatprep.subr.mxu0 0.0
        %483 = vmatpush1.xpose.msra.mxu0 %v462
        %484 = vmatprep.subr.mxu0 0.0
        %485 = vmatpush1.xpose.msra.mxu0 %v461
        %486 = vmatprep.subr.mxu0 0.0
        %487 = vmatpush1.xpose.msra.mxu0 %v460
        %488 = vmatprep.subr.mxu0 0.0
        %489 = vmatpush1.xpose.msra.mxu0 %v459
        %490 = vmatprep.subr.mxu0 0.0
        %491 = vmatpush1.xpose.msra.mxu0 %v458
        %492 = vmatprep.subr.mxu0 0.0
        %493 = vmatpush1.xpose.msra.mxu0 %v457
        %494 = vmatprep.subr.mxu0 0.0
        %495 = vmatpush1.xpose.msra.mxu0 %v456
        %496 = vmatprep.subr.mxu0 0.0
        %497 = vmatpush1.xpose.msra.mxu0 %v455
        %498 = vmatprep.subr.mxu0 0.0
        %499 = vmatpush1.xpose.msra.mxu0 %v454
        %500 = vmatprep.subr.mxu0 0.0
        %501 = vmatpush1.xpose.msra.mxu0 %v453
        %502 = vmatprep.subr.mxu0 0.0
        %503 = vmatpush1.xpose.msra.mxu0 %v452
        %504 = vmatprep.subr.mxu0 0.0
        %505 = vmatpush1.xpose.msra.mxu0 %v451
        %506 = vmatprep.subr.mxu0 0.0
        %507 = vmatpush2.xpose.msra.mxu0 0.0
        %508 = vmatprep.subr.mxu0 0.0
        %509 = vmatpush2.xpose.msra.mxu0 0.0
        %510 = vmatprep.subr.mxu0 0.0
        %511 = vmatpush2.xpose.msra.mxu0 0.0
        %512 = vmatprep.subr.mxu0 0.0
        %513 = vmatpush2.xpose.msra.mxu0 0.0
        %514 = vmatprep.subr.mxu0 0.0
        %515 = vmatpush2.xpose.msra.mxu0 0.0
        %516 = vmatprep.subr.mxu0 0.0
        %517 = vmatpush2.xpose.msra.mxu0 0.0
        %518 = vmatprep.subr.mxu0 0.0
        %519 = vmatpush2.xpose.msra.mxu0 0.0
        %520 = vmatprep.subr.mxu0 0.0
        %521 = vmatpush2.xpose.msra.mxu0 0.0
        %522 = vmatprep.subr.mxu0 0.0
        %523 = vmatpush2.xpose.msra.mxu0 0.0
        %524 = vmatprep.subr.mxu0 0.0
        %525 = vmatpush2.xpose.msra.mxu0 0.0
        %526 = vmatprep.subr.mxu0 0.0
        %527 = vmatpush2.xpose.msra.mxu0 0.0
        %528 = vmatprep.subr.mxu0 0.0
        %529 = vmatpush2.xpose.msra.mxu0 0.0
        %530 = vmatprep.subr.mxu0 0.0
        %531 = vmatpush2.xpose.msra.mxu0 0.0
        %532 = vmatprep.subr.mxu0 0.0
        %533 = vmatpush2.xpose.msra.mxu0 0.0
        %534 = vmatprep.subr.mxu0 0.0
        %535 = vmatpush2.xpose.msra.mxu0 0.0
        %536 = vmatprep.subr.mxu0 0.0
        %537 = vmatpush2.xpose.msra.mxu0 0.0
        %538 = vmatprep.mubr.f32.mxu0 0.0
        %539 = vmatmul.mubr.f32.gmra.mxu0 %v450
        %v540 = vpop.f32.mrf.mxu0
        %v541 = vadd.f32 %v472, %v540
        %v542 = vpop.f32.mrf.mxu0
        %543 = vdwg.mxu0
        %544 = vmax.xlane.f32.xlu0 %v541
        %v545 = vpop.xlane.xlu0 %544
        %v546 = vsub.f32 %v541, %v545
        %v547 = vmul.f32 %v546, 1.442695
        %v548 = vpow.pop %v547
        %549 = vadd.xlane.f32.xlu0 %v548
        %v550 = vpop.xlane.xlu0 %549
        %v551 = vld [vmem:[%s316] sm:$0xff]
        %v552 = vld [vmem:[%s316 + $0x8] sm:$0xff]
        %v553 = vld [vmem:[%s316 + $0x10] sm:$0xff]
        %v554 = vld [vmem:[%s316 + $0x18] sm:$0xff]
        %v555 = vld [vmem:[%s316 + $0x20] sm:$0xff]
        %v556 = vld [vmem:[%s316 + $0x28] sm:$0xff]
        %v557 = vld [vmem:[%s316 + $0x30] sm:$0xff]
        %v558 = vld [vmem:[%s316 + $0x38] sm:$0xff]
        %v559 = vld [vmem:[%s316 + $0x40] sm:$0xff]
        %v560 = vld [vmem:[%s316 + $0x48] sm:$0xff]
        %v561 = vld [vmem:[%s316 + $0x50] sm:$0xff]
        %v562 = vld [vmem:[%s316 + $0x58] sm:$0xff]
        %v563 = vld [vmem:[%s316 + $0x60] sm:$0xff]
        %v564 = vld [vmem:[%s316 + $0x68] sm:$0xff]
        %v565 = vld [vmem:[%s316 + $0x70] sm:$0xff]
        %v566 = vld [vmem:[%s316 + $0x78] sm:$0xff]
        %567 = vmatprep.subr.mxu0 0.0
        %568 = vmatpush1.msra.mxu0 %v566
        %569 = vmatprep.subr.mxu0 0.0
        %570 = vmatpush1.msra.mxu0 %v565
        %571 = vmatprep.subr.mxu0 0.0
        %572 = vmatpush1.msra.mxu0 %v564
        %573 = vmatprep.subr.mxu0 0.0
        %574 = vmatpush1.msra.mxu0 %v563
        %575 = vmatprep.subr.mxu0 0.0
        %576 = vmatpush1.msra.mxu0 %v562
        %577 = vmatprep.subr.mxu0 0.0
        %578 = vmatpush1.msra.mxu0 %v561
        %579 = vmatprep.subr.mxu0 0.0
        %580 = vmatpush1.msra.mxu0 %v560
        %581 = vmatprep.subr.mxu0 0.0
        %582 = vmatpush1.msra.mxu0 %v559
        %583 = vmatprep.subr.mxu0 0.0
        %584 = vmatpush1.msra.mxu0 %v558
        %585 = vmatprep.subr.mxu0 0.0
        %586 = vmatpush1.msra.mxu0 %v557
        %587 = vmatprep.subr.mxu0 0.0
        %588 = vmatpush1.msra.mxu0 %v556
        %589 = vmatprep.subr.mxu0 0.0
        %590 = vmatpush1.msra.mxu0 %v555
        %591 = vmatprep.subr.mxu0 0.0
        %592 = vmatpush1.msra.mxu0 %v554
        %593 = vmatprep.subr.mxu0 0.0
        %594 = vmatpush1.msra.mxu0 %v553
        %595 = vmatprep.subr.mxu0 0.0
        %596 = vmatpush1.msra.mxu0 %v552
        %597 = vmatprep.subr.mxu0 0.0
        %598 = vmatpush1.msra.mxu0 %v551
        %599 = vmatprep.subr.mxu0 0.0
        %600 = vmatpush2.msra.mxu0 0.0
        %601 = vmatprep.subr.mxu0 0.0
        %602 = vmatpush2.msra.mxu0 0.0
        %603 = vmatprep.subr.mxu0 0.0
        %604 = vmatpush2.msra.mxu0 0.0
        %605 = vmatprep.subr.mxu0 0.0
        %606 = vmatpush2.msra.mxu0 0.0
        %607 = vmatprep.subr.mxu0 0.0
        %608 = vmatpush2.msra.mxu0 0.0
        %609 = vmatprep.subr.mxu0 0.0
        %610 = vmatpush2.msra.mxu0 0.0
        %611 = vmatprep.subr.mxu0 0.0
        %612 = vmatpush2.msra.mxu0 0.0
        %613 = vmatprep.subr.mxu0 0.0
        %614 = vmatpush2.msra.mxu0 0.0
        %615 = vmatprep.subr.mxu0 0.0
        %616 = vmatpush2.msra.mxu0 0.0
        %617 = vmatprep.subr.mxu0 0.0
        %618 = vmatpush2.msra.mxu0 0.0
        %619 = vmatprep.subr.mxu0 0.0
        %620 = vmatpush2.msra.mxu0 0.0
        %621 = vmatprep.subr.mxu0 0.0
        %622 = vmatpush2.msra.mxu0 0.0
        %623 = vmatprep.subr.mxu0 0.0
        %624 = vmatpush2.msra.mxu0 0.0
        %625 = vmatprep.subr.mxu0 0.0
        %626 = vmatpush2.msra.mxu0 0.0
        %627 = vmatprep.subr.mxu0 0.0
        %628 = vmatpush2.msra.mxu0 0.0
        %629 = vmatprep.subr.mxu0 0.0
        %630 = vmatpush2.msra.mxu0 0.0
        %631 = vmatprep.mubr.f32.mxu0 0.0
        %632 = vmatmul.mubr.f32.gmra.mxu0 %v548
        %v633 = vpop.f32.mrf.mxu0
        %v634 = vadd.f32 0.0, %v633
        %v635 = vpop.f32.mrf.mxu0
        %636 = vdwg.mxu0
        %v637 = vrcp.pop %v550
        %v638 = vmul.f32 1.0, %v637
        %v639 = vmul.f32 %v634, %v638
        %640 = vst [vmem:[%s359] sm:$0xff] %v639
        %s641 = sand.u32 %s175, 1
        %s642 = scalar_lea.sflag [#allocation4], %s641
        %s643 = sand.u32 %s175, 1
        %s644 = smul.addr %s643, 8
        %s645 = scalar_lea.vmem [#allocation10], %s644
        // Predicated region
        $region57: #{tpu_custom_call.1} parent=39 // pred_check
          %p646 = pneg %p185
        $region58: #{tpu_custom_call.1} parent=39 // pred_check_branch
          %648 = sbr.rel (%p646) target = $region60
        $region59: #{tpu_custom_call.1} parent=39 // pred_region
          %s650 = ssub.s32 128, 128
          %651 = vsyncadd %s642, %s650
          %s652 = sadd.s32 %s31, %s30
          %s653 = smul.addr %s652, 128
          %s654 = scalar_lea.hbm %s5, %s653
          %s656 = sshll.u32 %s645, 4
          %s657 = int_to_ptr.vmem [resolvable:$true] %s656
          %659 = dma.vmem_to_hbm [thread:$0]  %s657, 128, %s654, %s642
        $region60: #{tpu_custom_call.1} parent=39 // pred_fallthru
          _
      $region40: #{tpu_custom_call.1} parent=5 // pred_fallthru
        _
      %p660 = scmp.le.s32.totalorder 2, %s21
      // Predicated region
      $region61: #{tpu_custom_call.1} parent=5 // pred_check
        %p661 = pneg %p660
      $region62: #{tpu_custom_call.1} parent=5 // pred_check_branch
        %663 = sbr.rel (%p661) target = $region64
      $region63: #{tpu_custom_call.1} parent=5 // pred_region
        %s664 = ssub.s32 %s21, 2
        // Predicated region
        $region65: #{tpu_custom_call.1} parent=63 // pred_check
          %p665 = pneg %p191
        $region66: #{tpu_custom_call.1} parent=63 // pred_check_branch
          %667 = sbr.rel (%p665) target = $region68
        $region67: #{tpu_custom_call.1} parent=63 // pred_region
          %s668 = sand.u32 %s176, 1
          %s669 = scalar_lea.sflag [#allocation4], %s668
          %s670 = sand.u32 %s176, 1
          %s671 = smul.addr %s670, 8
          %s672 = scalar_lea.vmem [#allocation10], %s671
          %673 = dma.done %s669, 128
        $region68: #{tpu_custom_call.1} parent=63 // pred_fallthru
          _
      $region64: #{tpu_custom_call.1} parent=5 // pred_fallthru
        _
    $region6: #{tpu_custom_call.1} parent=1 // loop_footer
      %s25 = sadd.s32 1, %s21
    $region7: #{tpu_custom_call.1} parent=1 // loop_footer_branch
      %20 = sbr.rel target = $region3
    $region8: #{tpu_custom_call.1} parent=1 // loop_exit
      _
    %674 = vsyncpa [#allocation3], 1
    %s675 = scalar_lea.sflag [#allocation3], 1
    %676 = vsyncpa %s675, 1
    %677 = vsyncpa [#allocation6], 1
    %s678 = scalar_lea.sflag [#allocation6], 1
    %679 = vsyncpa %s678, 1
    %680 = vsyncpa [#allocation9], 1
    %681 = vsyncpa [#allocation4], 1
    %s682 = scalar_lea.sflag [#allocation4], 1
    %683 = vsyncpa %s682, 1

// kernel: tpu_custom_call.1
$region0: #{tpu_custom_call.1}
  #allocation0 [shape = 'u32[]', space=smem, size = 0x4, offset = 0x4, fixed_abs, tag = 'smem constant byte address 0x4 - core index']
  #allocation1 [shape = 'u32[144,128]{1,0:T(1,128)}', space=vmem, size = 0x12000, scoped, tag = 'internal scratch']
  %s0 = inlined_call_operand.hbm [shape: f32[2,8,128], index: 0, kind: input, shape index: {}]
  %s1 = inlined_call_operand.hbm [shape: f32[2,128,128], index: 1, kind: input, shape index: {}]
  %s2 = inlined_call_operand.hbm [shape: f32[2,128,128], index: 2, kind: input, shape index: {}]
  %s3 = inlined_call_operand.hbm [shape: f32[128,128], index: 3, kind: input, shape index: {}]
  %s4 = inlined_call_operand.vmem [shape: f32[2,1,128], index: 4, kind: input, shape index: {}]
  %s5 = inlined_call_operand.hbm [shape: f32[2,8,128], index: 5, kind: output, shape index: {}]
  %s6 = sld [smem:[#allocation0]]
  $region69: #{tpu_custom_call.1} parent=0
    _
  %s8 = ssub.s32 1, %s6
  %s9 = scalar_select 0, %s8, %s6
  $region1: #{tpu_custom_call.1} parent=0
    #allocation2 [shape = 'u8[8192]{0}', space=vmem, size = 0x2000, scoped, tag = 'input window, operand 0']
    #allocation3 [shape = 's32[2]{0}', space=sflag, size = 0x8, scoped, tag = 'scoped memory for tpu_custom_call.1']
    #allocation4 [shape = 's32[2]{0}', space=sflag, size = 0x8, scoped, tag = 'scoped memory for tpu_custom_call.1']
    #allocation5 [shape = 'u8[131072]{0}', space=vmem, size = 0x20000, scoped, tag = 'input window, operand 1']
    #allocation6 [shape = 's32[2]{0}', space=sflag, size = 0x8, scoped, tag = 'scoped memory for tpu_custom_call.1']
    #allocation7 [shape = 'u8[131072]{0}', space=vmem, size = 0x20000, scoped, tag = 'input window, operand 2']
    #allocation8 [shape = 'u8[65536]{0}', space=vmem, size = 0x10000, scoped, tag = 'input window, operand 3, single buffered']
    #allocation9 [shape = 's32[1]{0}', space=sflag, size = 0x4, scoped, tag = 'scoped memory for tpu_custom_call.1']
    #allocation10 [shape = 'u8[8192]{0}', space=vmem, size = 0x2000, scoped, tag = 'output window, operand 0']
    %10 = vsyncpa [#allocation3], 0
    %s11 = scalar_lea.sflag [#allocation3], 1
    %12 = vsyncpa %s11, 0
    %13 = vsyncpa [#allocation6], 0
    %s14 = scalar_lea.sflag [#allocation6], 1
    %15 = vsyncpa %s14, 0
    %16 = vsyncpa [#allocation9], 0
    %17 = vsyncpa [#allocation4], 0
    %s18 = scalar_lea.sflag [#allocation4], 1
    %19 = vsyncpa %s18, 0
    loop: start=0, step=1, limit=4
    $region2: #{tpu_custom_call.1} parent=1 // loop_pre_header
      _
    $region3: #{tpu_custom_call.1} parent=1 // loop_header
      %s21 = sphi 0, %s25
      %p22 = scmp.ge.s32.totalorder %s21, 4
      %s28 = sphi 0, %s40
      %s29 = sphi 0, %s36
      %s30 = sphi 0, %s28
      %s31 = sphi 0, %s29
      %s32 = sphi 0, %s30
      %s33 = sphi 0, %s31
      %s45 = sphi 0, %s47
      %s48 = sphi 0, %s45
      %s49 = sphi 0, %s48
      %s65 = sphi 0, %s49
      %s71 = sphi 0, %s73
      %s74 = sphi 0, %s71
      %s75 = sphi 0, %s74
      %s91 = sphi 0, %s75
      %s97 = sphi 0, %s99
      %s100 = sphi 0, %s97
      %s101 = sphi 0, %s100
      %s117 = sphi 0, %s101
      %s121 = sphi 0, %s121
      %s123 = sphi 0, %s121
      %s124 = sphi 0, %s123
      %s138 = sphi 0, %s124
      %s144 = sphi 0, %s146
      %s147 = sphi 0, %s144
      %s148 = sphi 0, %s147
      %s164 = sphi 0, %s148
      %s172 = sphi 0, %s174
      %s175 = sphi 0, %s172
      %s176 = sphi 0, %s175
      %s192 = sphi 0, %s176
    $region4: #{tpu_custom_call.1} parent=1 // loop_header_branch
      %24 = sbr.rel (%p22) target = $region8
    $region5: #{tpu_custom_call.1} parent=1 // loop_body
      %s26 = ssub.s32 %s21, 1
      %s27 = ssub.s32 %s21, 2
      %s34 = sadd.s32 1, %s29
      %p35 = scmp.ge.s32.totalorder %s34, 1
      %s36 = scalar_select %p35, 0, %s34
      %s37 = sadd.s32 1, %s28
      %s38 = scalar_select %p35, %s37, %s28
      %p39 = scmp.ge.s32.totalorder %s38, 2
      %s40 = scalar_select %p39, 0, %s38
      %s41 = ssub.s32 %s28, %s40
      %s42 = ssub.s32 %s29, %s36
      %s43 = sor.u32 %s41, %s42
      %p44 = scmp.eq.s32.totalorder %s43, 0
      %s46 = sadd.s32 %s45, 1
      %s47 = scalar_select %p44, %s45, %s46
      %p50 = pneg %p44
      %p51 = scmp.eq.s32.totalorder %s21, 1
      %p52 = por %p50, %p51
      %p53 = scmp.ne.s32.totalorder %s45, %s48
      %p54 = scmp.eq.s32.totalorder %s21, 0
      %p55 = por %p53, %p54
      %p56 = scmp.ne.s32.totalorder %s45, %s48
      %p57 = scmp.eq.s32.totalorder %s26, 1
      %p58 = por %p56, %p57
      %p59 = scmp.ne.s32.totalorder %s48, %s49
      %p60 = scmp.eq.s32.totalorder %s26, 0
      %p61 = por %p59, %p60
      %p62 = scmp.ne.s32.totalorder %s48, %s49
      %p63 = scmp.eq.s32.totalorder %s27, 1
      %p64 = por %p62, %p63
      %p66 = scmp.ne.s32.totalorder %s49, %s65
      %p67 = scmp.eq.s32.totalorder %s27, 0
      %p68 = por %p66, %p67
      %s69 = ssub.s32 %s28, %s40
      %p70 = scmp.eq.s32.totalorder %s69, 0
      %s72 = sadd.s32 %s71, 1
      %s73 = scalar_select %p70, %s71, %s72
      %p76 = pneg %p70
      %p77 = scmp.eq.s32.totalorder %s21, 1
      %p78 = por %p76, %p77
      %p79 = scmp.ne.s32.totalorder %s71, %s74
      %p80 = scmp.eq.s32.totalorder %s21, 0
      %p81 = por %p79, %p80
      %p82 = scmp.ne.s32.totalorder %s71, %s74
      %p83 = scmp.eq.s32.totalorder %s26, 1
      %p84 = por %p82, %p83
      %p85 = scmp.ne.s32.totalorder %s74, %s75
      %p86 = scmp.eq.s32.totalorder %s26, 0
      %p87 = por %p85, %p86
      %p88 = scmp.ne.s32.totalorder %s74, %s75
      %p89 = scmp.eq.s32.totalorder %s27, 1
      %p90 = por %p88, %p89
      %p92 = scmp.ne.s32.totalorder %s75, %s91
      %p93 = scmp.eq.s32.totalorder %s27, 0
      %p94 = por %p92, %p93
      %s95 = ssub.s32 %s28, %s40
      %p96 = scmp.eq.s32.totalorder %s95, 0
      %s98 = sadd.s32 %s97, 1
      %s99 = scalar_select %p96, %s97, %s98
      %p102 = pneg %p96
      %p103 = scmp.eq.s32.totalorder %s21, 1
      %p104 = por %p102, %p103
      %p105 = scmp.ne.s32.totalorder %s97, %s100
      %p106 = scmp.eq.s32.totalorder %s21, 0
      %p107 = por %p105, %p106
      %p108 = scmp.ne.s32.totalorder %s97, %s100
      %p109 = scmp.eq.s32.totalorder %s26, 1
      %p110 = por %p108, %p109
      %p111 = scmp.ne.s32.totalorder %s100, %s101
      %p112 = scmp.eq.s32.totalorder %s26, 0
      %p113 = por %p111, %p112
      %p114 = scmp.ne.s32.totalorder %s100, %s101
      %p115 = scmp.eq.s32.totalorder %s27, 1
      %p116 = por %p114, %p115
      %p118 = scmp.ne.s32.totalorder %s101, %s117
      %p119 = scmp.eq.s32.totalorder %s27, 0
      %p120 = por %p118, %p119
      %s122 = sadd.s32 %s121, 1
      %p125 = scmp.eq.s32.totalorder %s21, 1
      %p126 = scmp.ne.s32.totalorder %s121, %s123
      %p127 = scmp.eq.s32.totalorder %s21, 0
      %p128 = por %p126, %p127
      %p129 = scmp.ne.s32.totalorder %s121, %s123
      %p130 = scmp.eq.s32.totalorder %s26, 1
      %p131 = por %p129, %p130
      %p132 = scmp.ne.s32.totalorder %s123, %s124
      %p133 = scmp.eq.s32.totalorder %s26, 0
      %p134 = por %p132, %p133
      %p135 = scmp.ne.s32.totalorder %s123, %s124
      %p136 = scmp.eq.s32.totalorder %s27, 1
      %p137 = por %p135, %p136
      %p139 = scmp.ne.s32.totalorder %s124, %s138
      %p140 = scmp.eq.s32.totalorder %s27, 0
      %p141 = por %p139, %p140
      %s142 = ssub.s32 %s28, %s40
      %p143 = scmp.eq.s32.totalorder %s142, 0
      %s145 = sadd.s32 %s144, 1
      %s146 = scalar_select %p143, %s144, %s145
      %p149 = pneg %p143
      %p150 = scmp.eq.s32.totalorder %s21, 1
      %p151 = por %p149, %p150
      %p152 = scmp.ne.s32.totalorder %s144, %s147
      %p153 = scmp.eq.s32.totalorder %s21, 0
      %p154 = por %p152, %p153
      %p155 = scmp.ne.s32.totalorder %s144, %s147
      %p156 = scmp.eq.s32.totalorder %s26, 1
      %p157 = por %p155, %p156
      %p158 = scmp.ne.s32.totalorder %s147, %s148
      %p159 = scmp.eq.s32.totalorder %s26, 0
      %p160 = por %p158, %p159
      %p161 = scmp.ne.s32.totalorder %s147, %s148
      %p162 = scmp.eq.s32.totalorder %s27, 1
      %p163 = por %p161, %p162
      %p165 = scmp.ne.s32.totalorder %s148, %s164
      %p166 = scmp.eq.s32.totalorder %s27, 0
      %p167 = por %p165, %p166
      %s168 = ssub.s32 %s28, %s40
      %s169 = ssub.s32 %s29, %s36
      %s170 = sor.u32 %s168, %s169
      %p171 = scmp.eq.s32.totalorder %s170, 0
      %s173 = sadd.s32 %s172, 1
      %s174 = scalar_select %p171, %s172, %s173
      %p177 = pneg %p171
      %p178 = scmp.eq.s32.totalorder %s21, 1
      %p179 = por %p177, %p178
      %p180 = scmp.ne.s32.totalorder %s172, %s175
      %p181 = scmp.eq.s32.totalorder %s21, 0
      %p182 = por %p180, %p181
      %p183 = scmp.ne.s32.totalorder %s172, %s175
      %p184 = scmp.eq.s32.totalorder %s26, 1
      %p185 = por %p183, %p184
      %p186 = scmp.ne.s32.totalorder %s175, %s176
      %p187 = scmp.eq.s32.totalorder %s26, 0
      %p188 = por %p186, %p187
      %p189 = scmp.ne.s32.totalorder %s175, %s176
      %p190 = scmp.eq.s32.totalorder %s27, 1
      %p191 = por %p189, %p190
      %p193 = scmp.ne.s32.totalorder %s176, %s192
      %p194 = scmp.eq.s32.totalorder %s27, 0
      %p195 = por %p193, %p194
      %p196 = scmp.le.s32.totalorder 1, %s21
      %p197 = scmp.lt.s32.totalorder %s21, 3
      %p198 = pnand %p196, %p197
      %p199 = pneg %p198
      // Predicated region
      $region9: #{tpu_custom_call.1} parent=5 // pred_check
        _
      $region10: #{tpu_custom_call.1} parent=5 // pred_check_branch
        %201 = sbr.rel (%p198) target = $region12
      $region11: #{tpu_custom_call.1} parent=5 // pred_region
        %s202 = ssub.s32 %s21, 1
        // Predicated region
        $region13: #{tpu_custom_call.1} parent=11 // pred_check
          %p203 = pneg %p134
        $region14: #{tpu_custom_call.1} parent=11 // pred_check_branch
          %205 = sbr.rel (%p203) target = $region16
        $region15: #{tpu_custom_call.1} parent=11 // pred_region
          %s207 = ssub.s32 2048, 2048
          %208 = vsyncadd [#allocation9], %s207
          %s209 = sshll.u32 [#allocation8], 4
          %s210 = int_to_ptr.vmem [resolvable:$true] %s209
          %215 = dma.hbm_to_vmem [thread:$0]  %s3, 2048, %s210, [#allocation9], 128, 128, 8
        $region16: #{tpu_custom_call.1} parent=11 // pred_fallthru
          _
      $region12: #{tpu_custom_call.1} parent=5 // pred_fallthru
        _
      %p216 = scmp.lt.s32.totalorder %s21, 2
      // Predicated region
      $region17: #{tpu_custom_call.1} parent=5 // pred_check
        %p217 = pneg %p216
      $region18: #{tpu_custom_call.1} parent=5 // pred_check_branch
        %219 = sbr.rel (%p217) target = $region20
      $region19: #{tpu_custom_call.1} parent=5 // pred_region
        // Predicated region
        $region21: #{tpu_custom_call.1} parent=19 // pred_check
          %p220 = pneg %p55
        $region22: #{tpu_custom_call.1} parent=19 // pred_check_branch
          %222 = sbr.rel (%p220) target = $region24
        $region23: #{tpu_custom_call.1} parent=19 // pred_region
          %s223 = sand.u32 %s45, 1
          %s224 = scalar_lea.sflag [#allocation3], %s223
          %s225 = sand.u32 %s45, 1
          %s226 = smul.addr %s225, 8
          %s227 = scalar_lea.vmem [#allocation2], %s226
          %s229 = ssub.s32 128, 128
          %230 = vsyncadd %s224, %s229
          %s231 = sadd.s32 %s29, %s28
          %s232 = smul.addr %s231, 128
          %s233 = scalar_lea.hbm %s0, %s232
          %s235 = sshll.u32 %s227, 4
          %s236 = int_to_ptr.vmem [resolvable:$true] %s235
          %238 = dma.hbm_to_vmem [thread:$0]  %s233, 128, %s236, %s224
        $region24: #{tpu_custom_call.1} parent=19 // pred_fallthru
          _
        // Predicated region
        $region25: #{tpu_custom_call.1} parent=19 // pred_check
          %p239 = pneg %p81
        $region26: #{tpu_custom_call.1} parent=19 // pred_check_branch
          %241 = sbr.rel (%p239) target = $region28
        $region27: #{tpu_custom_call.1} parent=19 // pred_region
          %s242 = sand.u32 %s21, 1
          %s243 = scalar_lea.sflag [#allocation6], %s242
          %s244 = sand.u32 %s71, 1
          %s245 = smul.addr %s244, 128
          %s246 = scalar_lea.vmem [#allocation5], %s245
          %s248 = ssub.s32 2048, 2048
          %249 = vsyncadd %s243, %s248
          %s250 = smul.addr %s28, 16
          %s251 = smul.addr %s250, 128
          %s252 = scalar_lea.hbm %s1, %s251
          %s253 = sshll.u32 %s246, 4
          %s254 = int_to_ptr.vmem [resolvable:$true] %s253
          %259 = dma.hbm_to_vmem [thread:$0]  %s252, 2048, %s254, %s243, 128, 128, 8
        $region28: #{tpu_custom_call.1} parent=19 // pred_fallthru
          _
        // Predicated region
        $region29: #{tpu_custom_call.1} parent=19 // pred_check
          %p260 = pneg %p107
        $region30: #{tpu_custom_call.1} parent=19 // pred_check_branch
          %262 = sbr.rel (%p260) target = $region32
        $region31: #{tpu_custom_call.1} parent=19 // pred_region
          %s263 = sand.u32 %s21, 1
          %s264 = scalar_lea.sflag [#allocation6], %s263
          %s265 = sand.u32 %s97, 1
          %s266 = smul.addr %s265, 128
          %s267 = scalar_lea.vmem [#allocation7], %s266
          %s269 = ssub.s32 2048, 2048
          %270 = vsyncadd %s264, %s269
          %s271 = smul.addr %s28, 16
          %s272 = smul.addr %s271, 128
          %s273 = scalar_lea.hbm %s2, %s272
          %s274 = sshll.u32 %s267, 4
          %s275 = int_to_ptr.vmem [resolvable:$true] %s274
          %280 = dma.hbm_to_vmem [thread:$0]  %s273, 2048, %s275, %s264, 128, 128, 8
        $region32: #{tpu_custom_call.1} parent=19 // pred_fallthru
          _
        // Predicated region
        $region33: #{tpu_custom_call.1} parent=19 // pred_check
          %p281 = pneg %p154
        $region34: #{tpu_custom_call.1} parent=19 // pred_check_branch
          %283 = sbr.rel (%p281) target = $region36
        $region35: #{tpu_custom_call.1} parent=19 // pred_region
          %p284 = scmp.lt.s32.totalorder %s28, 1
          %s285 = scalar_select %p284, %s28, 1
          %s286 = scalar_lea.vmem %s4, %s285
        $region36: #{tpu_custom_call.1} parent=19 // pred_fallthru
          _
      $region20: #{tpu_custom_call.1} parent=5 // pred_fallthru
        _
      %p287 = scmp.le.s32.totalorder 1, %s21
      %p288 = scmp.lt.s32.totalorder %s21, 3
      %p289 = pnand %p287, %p288
      %p290 = pneg %p289
      // Predicated region
      $region37: #{tpu_custom_call.1} parent=5 // pred_check
        _
      $region38: #{tpu_custom_call.1} parent=5 // pred_check_branch
        %292 = sbr.rel (%p289) target = $region40
      $region39: #{tpu_custom_call.1} parent=5 // pred_region
        %s293 = ssub.s32 %s21, 1
        %s294 = sand.u32 %s48, 1
        %s295 = scalar_lea.sflag [#allocation3], %s294
        %s296 = sand.u32 %s48, 1
        %s297 = smul.addr %s296, 8
        %s298 = scalar_lea.vmem [#allocation2], %s297
        // Predicated region
        $region41: #{tpu_custom_call.1} parent=39 // pred_check
          %p299 = pneg %p61
        $region42: #{tpu_custom_call.1} parent=39 // pred_check_branch
          %301 = sbr.rel (%p299) target = $region44
        $region43: #{tpu_custom_call.1} parent=39 // pred_region
          %302 = dma.done %s295, 128
        $region44: #{tpu_custom_call.1} parent=39 // pred_fallthru
          _
        %s303 = sand.u32 %s26, 1
        %s304 = scalar_lea.sflag [#allocation6], %s303
        %s305 = sand.u32 %s74, 1
        %s306 = smul.addr %s305, 128
        %s307 = scalar_lea.vmem [#allocation5], %s306
        // Predicated region
        $region45: #{tpu_custom_call.1} parent=39 // pred_check
          %p308 = pneg %p87
        $region46: #{tpu_custom_call.1} parent=39 // pred_check_branch
          %310 = sbr.rel (%p308) target = $region48
        $region47: #{tpu_custom_call.1} parent=39 // pred_region
          %311 = dma.done %s304, 2048
        $region48: #{tpu_custom_call.1} parent=39 // pred_fallthru
          _
        %s312 = sand.u32 %s26, 1
        %s313 = scalar_lea.sflag [#allocation6], %s312
        %s314 = sand.u32 %s100, 1
        %s315 = smul.addr %s314, 128
        %s316 = scalar_lea.vmem [#allocation7], %s315
        // Predicated region
        $region49: #{tpu_custom_call.1} parent=39 // pred_check
          %p317 = pneg %p113
        $region50: #{tpu_custom_call.1} parent=39 // pred_check_branch
          %319 = sbr.rel (%p317) target = $region52
        $region51: #{tpu_custom_call.1} parent=39 // pred_region
          %320 = dma.done %s313, 2048
        $region52: #{tpu_custom_call.1} parent=39 // pred_fallthru
          _
        // Predicated region
        $region53: #{tpu_custom_call.1} parent=39 // pred_check
          %p321 = pneg %p134
        $region54: #{tpu_custom_call.1} parent=39 // pred_check_branch
          %323 = sbr.rel (%p321) target = $region56
        $region55: #{tpu_custom_call.1} parent=39 // pred_region
          %324 = dma.done [#allocation9], 2048
        $region56: #{tpu_custom_call.1} parent=39 // pred_fallthru
          _
        %s325 = sand.u32 %s48, 1
        %s326 = scalar_lea.sflag [#allocation3], %s325
        %s327 = sand.u32 %s48, 1
        %s328 = smul.addr %s327, 8
        %s329 = scalar_lea.vmem [#allocation2], %s328
        %p330 = pneg %p61
        %p331 = pneg %p58
        %s332 = sand.u32 %s26, 1
        %s333 = scalar_lea.sflag [#allocation6], %s332
        %s334 = sand.u32 %s74, 1
        %s335 = smul.addr %s334, 128
        %s336 = scalar_lea.vmem [#allocation5], %s335
        %p337 = pneg %p87
        %p338 = pneg %p84
        %s339 = sand.u32 %s26, 1
        %s340 = scalar_lea.sflag [#allocation6], %s339
        %s341 = sand.u32 %s100, 1
        %s342 = smul.addr %s341, 128
        %s343 = scalar_lea.vmem [#allocation7], %s342
        %p344 = pneg %p113
        %p345 = pneg %p110
        %p346 = pneg %p134
        %p347 = pneg %p131
        %p348 = scmp.lt.s32.totalorder %s30, 1
        %s349 = scalar_select %p348, %s30, 1
        %s350 = scalar_lea.vmem %s4, %s349
        %p351 = pneg %p160
        %p352 = pneg %p157
        %p353 = pneg %p188
        %p354 = pneg %p185
        %s355 = sand.u32 %s175, 1
        %s356 = scalar_lea.sflag [#allocation4], %s355
        %s357 = sand.u32 %s175, 1
        %s358 = smul.addr %s357, 8
        %s359 = scalar_lea.vmem [#allocation10], %s358
        %p360 = scmp.lt.s32.totalorder %s30, 1
        %s361 = scalar_select %p360, %s30, 1
        %s362 = scalar_lea.vmem %s4, %s361
        %v363 = vld [vmem:[%s298] sm:$0xff]
        %v364 = vld [vmem:[#allocation8] sm:$0xff]
        %v365 = vld [vmem:[#allocation8 + $0x8] sm:$0xff]
        %v366 = vld [vmem:[#allocation8 + $0x10] sm:$0xff]
        %v367 = vld [vmem:[#allocation8 + $0x18] sm:$0xff]
        %v368 = vld [vmem:[#allocation8 + $0x20] sm:$0xff]
        %v369 = vld [vmem:[#allocation8 + $0x28] sm:$0xff]
        %v370 = vld [vmem:[#allocation8 + $0x30] sm:$0xff]
        %v371 = vld [vmem:[#allocation8 + $0x38] sm:$0xff]
        %v372 = vld [vmem:[#allocation8 + $0x40] sm:$0xff]
        %v373 = vld [vmem:[#allocation8 + $0x48] sm:$0xff]
        %v374 = vld [vmem:[#allocation8 + $0x50] sm:$0xff]
        %v375 = vld [vmem:[#allocation8 + $0x58] sm:$0xff]
        %v376 = vld [vmem:[#allocation8 + $0x60] sm:$0xff]
        %v377 = vld [vmem:[#allocation8 + $0x68] sm:$0xff]
        %v378 = vld [vmem:[#allocation8 + $0x70] sm:$0xff]
        %v379 = vld [vmem:[#allocation8 + $0x78] sm:$0xff]
        %380 = vmatprep.subr.mxu0 0.0
        %381 = vmatpush1.msra.mxu0 %v379
        %382 = vmatprep.subr.mxu0 0.0
        %383 = vmatpush1.msra.mxu0 %v378
        %384 = vmatprep.subr.mxu0 0.0
        %385 = vmatpush1.msra.mxu0 %v377
        %386 = vmatprep.subr.mxu0 0.0
        %387 = vmatpush1.msra.mxu0 %v376
        %388 = vmatprep.subr.mxu0 0.0
        %389 = vmatpush1.msra.mxu0 %v375
        %390 = vmatprep.subr.mxu0 0.0
        %391 = vmatpush1.msra.mxu0 %v374
        %392 = vmatprep.subr.mxu0 0.0
        %393 = vmatpush1.msra.mxu0 %v373
        %394 = vmatprep.subr.mxu0 0.0
        %395 = vmatpush1.msra.mxu0 %v372
        %396 = vmatprep.subr.mxu0 0.0
        %397 = vmatpush1.msra.mxu0 %v371
        %398 = vmatprep.subr.mxu0 0.0
        %399 = vmatpush1.msra.mxu0 %v370
        %400 = vmatprep.subr.mxu0 0.0
        %401 = vmatpush1.msra.mxu0 %v369
        %402 = vmatprep.subr.mxu0 0.0
        %403 = vmatpush1.msra.mxu0 %v368
        %404 = vmatprep.subr.mxu0 0.0
        %405 = vmatpush1.msra.mxu0 %v367
        %406 = vmatprep.subr.mxu0 0.0
        %407 = vmatpush1.msra.mxu0 %v366
        %408 = vmatprep.subr.mxu0 0.0
        %409 = vmatpush1.msra.mxu0 %v365
        %410 = vmatprep.subr.mxu0 0.0
        %411 = vmatpush1.msra.mxu0 %v364
        %412 = vmatprep.subr.mxu0 0.0
        %413 = vmatpush2.msra.mxu0 0.0
        %414 = vmatprep.subr.mxu0 0.0
        %415 = vmatpush2.msra.mxu0 0.0
        %416 = vmatprep.subr.mxu0 0.0
        %417 = vmatpush2.msra.mxu0 0.0
        %418 = vmatprep.subr.mxu0 0.0
        %419 = vmatpush2.msra.mxu0 0.0
        %420 = vmatprep.subr.mxu0 0.0
        %421 = vmatpush2.msra.mxu0 0.0
        %422 = vmatprep.subr.mxu0 0.0
        %423 = vmatpush2.msra.mxu0 0.0
        %424 = vmatprep.subr.mxu0 0.0
        %425 = vmatpush2.msra.mxu0 0.0
        %426 = vmatprep.subr.mxu0 0.0
        %427 = vmatpush2.msra.mxu0 0.0
        %428 = vmatprep.subr.mxu0 0.0
        %429 = vmatpush2.msra.mxu0 0.0
        %430 = vmatprep.subr.mxu0 0.0
        %431 = vmatpush2.msra.mxu0 0.0
        %432 = vmatprep.subr.mxu0 0.0
        %433 = vmatpush2.msra.mxu0 0.0
        %434 = vmatprep.subr.mxu0 0.0
        %435 = vmatpush2.msra.mxu0 0.0
        %436 = vmatprep.subr.mxu0 0.0
        %437 = vmatpush2.msra.mxu0 0.0
        %438 = vmatprep.subr.mxu0 0.0
        %439 = vmatpush2.msra.mxu0 0.0
        %440 = vmatprep.subr.mxu0 0.0
        %441 = vmatpush2.msra.mxu0 0.0
        %442 = vmatprep.subr.mxu0 0.0
        %443 = vmatpush2.msra.mxu0 0.0
        %444 = vmatprep.mubr.f32.mxu0 0.0
        %445 = vmatmul.mubr.f32.gmra.mxu0 %v363
        %v446 = vpop.f32.mrf.mxu0
        %v447 = vadd.f32 0.0, %v446
        %v448 = vpop.f32.mrf.mxu0
        %449 = vdwg.mxu0
        %v450 = vmax.f32 %v447, 0.0
        %v451 = vld [vmem:[%s307] sm:$0xff]
        %v452 = vld [vmem:[%s307 + $0x8] sm:$0xff]
        %v453 = vld [vmem:[%s307 + $0x10] sm:$0xff]
        %v454 = vld [vmem:[%s307 + $0x18] sm:$0xff]
        %v455 = vld [vmem:[%s307 + $0x20] sm:$0xff]
        %v456 = vld [vmem:[%s307 + $0x28] sm:$0xff]
        %v457 = vld [vmem:[%s307 + $0x30] sm:$0xff]
        %v458 = vld [vmem:[%s307 + $0x38] sm:$0xff]
        %v459 = vld [vmem:[%s307 + $0x40] sm:$0xff]
        %v460 = vld [vmem:[%s307 + $0x48] sm:$0xff]
        %v461 = vld [vmem:[%s307 + $0x50] sm:$0xff]
        %v462 = vld [vmem:[%s307 + $0x58] sm:$0xff]
        %v463 = vld [vmem:[%s307 + $0x60] sm:$0xff]
        %v464 = vld [vmem:[%s307 + $0x68] sm:$0xff]
        %v465 = vld [vmem:[%s307 + $0x70] sm:$0xff]
        %v466 = vld [vmem:[%s307 + $0x78] sm:$0xff]
        %v467 = vld [vmem:[%s362] sm:$0x1]
        %v469 = vlaneseq
        %v470 = vshrl.u32 %v469, 7
        %v471 = vsub.s32 0, %v470
        %v472 = vrot.slane %v467, %v471
        %474 = vmatprep.subr.mxu0 0.0
        %475 = vmatpush1.xpose.msra.mxu0 %v466
        %476 = vmatprep.subr.mxu0 0.0
        %477 = vmatpush1.xpose.msra.mxu0 %v465
        %478 = vmatprep.subr.mxu0 0.0
        %479 = vmatpush1.xpose.msra.mxu0 %v464
        %480 = vmatprep.subr.mxu0 0.0
        %481 = vmatpush1.xpose.msra.mxu0 %v463
        %482 = vmatprep.subr.mxu0 0.0
        %483 = vmatpush1.xpose.msra.mxu0 %v462
        %484 = vmatprep.subr.mxu0 0.0
        %485 = vmatpush1.xpose.msra.mxu0 %v461
        %486 = vmatprep.subr.mxu0 0.0
        %487 = vmatpush1.xpose.msra.mxu0 %v460
        %488 = vmatprep.subr.mxu0 0.0
        %489 = vmatpush1.xpose.msra.mxu0 %v459
        %490 = vmatprep.subr.mxu0 0.0
        %491 = vmatpush1.xpose.msra.mxu0 %v458
        %492 = vmatprep.subr.mxu0 0.0
        %493 = vmatpush1.xpose.msra.mxu0 %v457
        %494 = vmatprep.subr.mxu0 0.0
        %495 = vmatpush1.xpose.msra.mxu0 %v456
        %496 = vmatprep.subr.mxu0 0.0
        %497 = vmatpush1.xpose.msra.mxu0 %v455
        %498 = vmatprep.subr.mxu0 0.0
        %499 = vmatpush1.xpose.msra.mxu0 %v454
        %500 = vmatprep.subr.mxu0 0.0
        %501 = vmatpush1.xpose.msra.mxu0 %v453
        %502 = vmatprep.subr.mxu0 0.0
        %503 = vmatpush1.xpose.msra.mxu0 %v452
        %504 = vmatprep.subr.mxu0 0.0
        %505 = vmatpush1.xpose.msra.mxu0 %v451
        %506 = vmatprep.subr.mxu0 0.0
        %507 = vmatpush2.xpose.msra.mxu0 0.0
        %508 = vmatprep.subr.mxu0 0.0
        %509 = vmatpush2.xpose.msra.mxu0 0.0
        %510 = vmatprep.subr.mxu0 0.0
        %511 = vmatpush2.xpose.msra.mxu0 0.0
        %512 = vmatprep.subr.mxu0 0.0
        %513 = vmatpush2.xpose.msra.mxu0 0.0
        %514 = vmatprep.subr.mxu0 0.0
        %515 = vmatpush2.xpose.msra.mxu0 0.0
        %516 = vmatprep.subr.mxu0 0.0
        %517 = vmatpush2.xpose.msra.mxu0 0.0
        %518 = vmatprep.subr.mxu0 0.0
        %519 = vmatpush2.xpose.msra.mxu0 0.0
        %520 = vmatprep.subr.mxu0 0.0
        %521 = vmatpush2.xpose.msra.mxu0 0.0
        %522 = vmatprep.subr.mxu0 0.0
        %523 = vmatpush2.xpose.msra.mxu0 0.0
        %524 = vmatprep.subr.mxu0 0.0
        %525 = vmatpush2.xpose.msra.mxu0 0.0
        %526 = vmatprep.subr.mxu0 0.0
        %527 = vmatpush2.xpose.msra.mxu0 0.0
        %528 = vmatprep.subr.mxu0 0.0
        %529 = vmatpush2.xpose.msra.mxu0 0.0
        %530 = vmatprep.subr.mxu0 0.0
        %531 = vmatpush2.xpose.msra.mxu0 0.0
        %532 = vmatprep.subr.mxu0 0.0
        %533 = vmatpush2.xpose.msra.mxu0 0.0
        %534 = vmatprep.subr.mxu0 0.0
        %535 = vmatpush2.xpose.msra.mxu0 0.0
        %536 = vmatprep.subr.mxu0 0.0
        %537 = vmatpush2.xpose.msra.mxu0 0.0
        %538 = vmatprep.mubr.f32.mxu0 0.0
        %539 = vmatmul.mubr.f32.gmra.mxu0 %v450
        %v540 = vpop.f32.mrf.mxu0
        %v541 = vadd.f32 %v472, %v540
        %v542 = vpop.f32.mrf.mxu0
        %543 = vdwg.mxu0
        %544 = vmax.xlane.f32.xlu0 %v541
        %v545 = vpop.xlane.xlu0 %544
        %v546 = vsub.f32 %v541, %v545
        %v547 = vmul.f32 %v546, 1.442695
        %v548 = vpow.pop %v547
        %549 = vadd.xlane.f32.xlu0 %v548
        %v550 = vpop.xlane.xlu0 %549
        %v551 = vld [vmem:[%s316] sm:$0xff]
        %v552 = vld [vmem:[%s316 + $0x8] sm:$0xff]
        %v553 = vld [vmem:[%s316 + $0x10] sm:$0xff]
        %v554 = vld [vmem:[%s316 + $0x18] sm:$0xff]
        %v555 = vld [vmem:[%s316 + $0x20] sm:$0xff]
        %v556 = vld [vmem:[%s316 + $0x28] sm:$0xff]
        %v557 = vld [vmem:[%s316 + $0x30] sm:$0xff]
        %v558 = vld [vmem:[%s316 + $0x38] sm:$0xff]
        %v559 = vld [vmem:[%s316 + $0x40] sm:$0xff]
        %v560 = vld [vmem:[%s316 + $0x48] sm:$0xff]
        %v561 = vld [vmem:[%s316 + $0x50] sm:$0xff]
        %v562 = vld [vmem:[%s316 + $0x58] sm:$0xff]
        %v563 = vld [vmem:[%s316 + $0x60] sm:$0xff]
        %v564 = vld [vmem:[%s316 + $0x68] sm:$0xff]
        %v565 = vld [vmem:[%s316 + $0x70] sm:$0xff]
        %v566 = vld [vmem:[%s316 + $0x78] sm:$0xff]
        %567 = vmatprep.subr.mxu0 0.0
        %568 = vmatpush1.msra.mxu0 %v566
        %569 = vmatprep.subr.mxu0 0.0
        %570 = vmatpush1.msra.mxu0 %v565
        %571 = vmatprep.subr.mxu0 0.0
        %572 = vmatpush1.msra.mxu0 %v564
        %573 = vmatprep.subr.mxu0 0.0
        %574 = vmatpush1.msra.mxu0 %v563
        %575 = vmatprep.subr.mxu0 0.0
        %576 = vmatpush1.msra.mxu0 %v562
        %577 = vmatprep.subr.mxu0 0.0
        %578 = vmatpush1.msra.mxu0 %v561
        %579 = vmatprep.subr.mxu0 0.0
        %580 = vmatpush1.msra.mxu0 %v560
        %581 = vmatprep.subr.mxu0 0.0
        %582 = vmatpush1.msra.mxu0 %v559
        %583 = vmatprep.subr.mxu0 0.0
        %584 = vmatpush1.msra.mxu0 %v558
        %585 = vmatprep.subr.mxu0 0.0
        %586 = vmatpush1.msra.mxu0 %v557
        %587 = vmatprep.subr.mxu0 0.0
        %588 = vmatpush1.msra.mxu0 %v556
        %589 = vmatprep.subr.mxu0 0.0
        %590 = vmatpush1.msra.mxu0 %v555
        %591 = vmatprep.subr.mxu0 0.0
        %592 = vmatpush1.msra.mxu0 %v554
        %593 = vmatprep.subr.mxu0 0.0
        %594 = vmatpush1.msra.mxu0 %v553
        %595 = vmatprep.subr.mxu0 0.0
        %596 = vmatpush1.msra.mxu0 %v552
        %597 = vmatprep.subr.mxu0 0.0
        %598 = vmatpush1.msra.mxu0 %v551
        %599 = vmatprep.subr.mxu0 0.0
        %600 = vmatpush2.msra.mxu0 0.0
        %601 = vmatprep.subr.mxu0 0.0
        %602 = vmatpush2.msra.mxu0 0.0
        %603 = vmatprep.subr.mxu0 0.0
        %604 = vmatpush2.msra.mxu0 0.0
        %605 = vmatprep.subr.mxu0 0.0
        %606 = vmatpush2.msra.mxu0 0.0
        %607 = vmatprep.subr.mxu0 0.0
        %608 = vmatpush2.msra.mxu0 0.0
        %609 = vmatprep.subr.mxu0 0.0
        %610 = vmatpush2.msra.mxu0 0.0
        %611 = vmatprep.subr.mxu0 0.0
        %612 = vmatpush2.msra.mxu0 0.0
        %613 = vmatprep.subr.mxu0 0.0
        %614 = vmatpush2.msra.mxu0 0.0
        %615 = vmatprep.subr.mxu0 0.0
        %616 = vmatpush2.msra.mxu0 0.0
        %617 = vmatprep.subr.mxu0 0.0
        %618 = vmatpush2.msra.mxu0 0.0
        %619 = vmatprep.subr.mxu0 0.0
        %620 = vmatpush2.msra.mxu0 0.0
        %621 = vmatprep.subr.mxu0 0.0
        %622 = vmatpush2.msra.mxu0 0.0
        %623 = vmatprep.subr.mxu0 0.0
        %624 = vmatpush2.msra.mxu0 0.0
        %625 = vmatprep.subr.mxu0 0.0
        %626 = vmatpush2.msra.mxu0 0.0
        %627 = vmatprep.subr.mxu0 0.0
        %628 = vmatpush2.msra.mxu0 0.0
        %629 = vmatprep.subr.mxu0 0.0
        %630 = vmatpush2.msra.mxu0 0.0
        %631 = vmatprep.mubr.f32.mxu0 0.0
        %632 = vmatmul.mubr.f32.gmra.mxu0 %v548
        %v633 = vpop.f32.mrf.mxu0
        %v634 = vadd.f32 0.0, %v633
        %v635 = vpop.f32.mrf.mxu0
        %636 = vdwg.mxu0
        %v637 = vrcp.pop %v550
        %v638 = vmul.f32 1.0, %v637
        %v639 = vmul.f32 %v634, %v638
        %640 = vst [vmem:[%s359] sm:$0xff] %v639
        %s641 = sand.u32 %s175, 1
        %s642 = scalar_lea.sflag [#allocation4], %s641
        %s643 = sand.u32 %s175, 1
        %s644 = smul.addr %s643, 8
        %s645 = scalar_lea.vmem [#allocation10], %s644
        // Predicated region
        $region57: #{tpu_custom_call.1} parent=39 // pred_check
          %p646 = pneg %p185
        $region58: #{tpu_custom_call.1} parent=39 // pred_check_branch
          %648 = sbr.rel (%p646) target = $region60
        $region59: #{tpu_custom_call.1} parent=39 // pred_region
          %s650 = ssub.s32 128, 128
          %651 = vsyncadd %s642, %s650
          %s652 = sadd.s32 %s31, %s30
          %s653 = smul.addr %s652, 128
          %s654 = scalar_lea.hbm %s5, %s653
          %s656 = sshll.u32 %s645, 4
          %s657 = int_to_ptr.vmem [resolvable:$true] %s656
          %659 = dma.vmem_to_hbm [thread:$0]  %s657, 128, %s654, %s642
        $region60: #{tpu_custom_call.1} parent=39 // pred_fallthru
          _
      $region40: #{tpu_custom_call.1} parent=5 // pred_fallthru
        _
      %p660 = scmp.le.s32.totalorder 2, %s21
      // Predicated region
      $region61: #{tpu_custom_call.1} parent=5 // pred_check
        %p661 = pneg %p660
      $region62: #{tpu_custom_call.1} parent=5 // pred_check_branch
        %663 = sbr.rel (%p661) target = $region64
      $region63: #{tpu_custom_call.1} parent=5 // pred_region
        %s664 = ssub.s32 %s21, 2
        // Predicated region
        $region65: #{tpu_custom_call.1} parent=63 // pred_check
          %p665 = pneg %p191
        $region66: #{tpu_custom_call.1} parent=63 // pred_check_branch
          %667 = sbr.rel (%p665) target = $region68
        $region67: #{tpu_custom_call.1} parent=63 // pred_region
          %s668 = sand.u32 %s176, 1
          %s669 = scalar_lea.sflag [#allocation4], %s668
          %s670 = sand.u32 %s176, 1
          %s671 = smul.addr %s670, 8
          %s672 = scalar_lea.vmem [#allocation10], %s671
          %673 = dma.done %s669, 128
        $region68: #{tpu_custom_call.1} parent=63 // pred_fallthru
          _
      $region64: #{tpu_custom_call.1} parent=5 // pred_fallthru
        _
    $region6: #{tpu_custom_call.1} parent=1 // loop_footer
      %s25 = sadd.s32 1, %s21
    $region7: #{tpu_custom_call.1} parent=1 // loop_footer_branch
      %20 = sbr.rel target = $region3
    $region8: #{tpu_custom_call.1} parent=1 // loop_exit
      _
    %674 = vsyncpa [#allocation3], 1
    %s675 = scalar_lea.sflag [#allocation3], 1
    %676 = vsyncpa %s675, 1
    %677 = vsyncpa [#allocation6], 1
    %s678 = scalar_lea.sflag [#allocation6], 1
    %679 = vsyncpa %s678, 1
    %680 = vsyncpa [#allocation9], 1
    %681 = vsyncpa [#allocation4], 1
    %s682 = scalar_lea.sflag [#allocation4], 1
    %683 = vsyncpa %s682, 1

</llo_original>
